<compile_context>
chip_gen: v7x
topology: tpu7x:2x2x1
jax: 0.10.0
libtpu: 0.0.40
codegen_flags: <defaults>
</compile_context>

<pallas_src>
import jax
import jax.numpy as jnp
from jax.experimental import pallas as pl
from jax.experimental.pallas import tpu as pltpu

C1 = 0.01 ** 2
C2 = 0.03 ** 2


def _make_ssim_kernel(H: int, W: int):
    """Kernel body for a (TILE_BC, H, W) block of unpadded channels."""

    def _reflect_pad(a):
        # nn.ReflectionPad2d(1) built in VMEM: mirror row/col 1 and H-2 / W-2.
        a = jnp.concatenate([a[:, 1:2, :], a, a[:, H - 2:H - 1, :]], axis=1)
        a = jnp.concatenate([a[:, :, 1:2], a, a[:, :, W - 2:W - 1]], axis=2)
        return a

    def _col3(r):
        # 3-tap sum along the sublane (H) axis: (T, H+2, W) -> (T, H, W).
        return r[:, 0:H, :] + r[:, 1:H + 1, :] + r[:, 2:H + 2, :]

    def kernel(x_ref, y_ref, o_ref):
        x = x_ref[...].astype(jnp.float32)   # (T, H, W)
        y = y_ref[...].astype(jnp.float32)

        xp = _reflect_pad(x)                 # (T, H+2, W+2)
        yp = _reflect_pad(y)

        # Shared lane-shifted tiles (width W) on the row-padded slabs.
        x0 = xp[:, :, 0:W]
        x1 = xp[:, :, 1:W + 1]
        x2 = xp[:, :, 2:W + 2]
        y0 = yp[:, :, 0:W]
        y1 = yp[:, :, 1:W + 1]
        y2 = yp[:, :, 2:W + 2]

        # Row (lane-direction) 3-tap sums of the five pooled quantities.
        rx = x0 + x1 + x2
        ry = y0 + y1 + y2
        rxx = x0 * x0 + x1 * x1 + x2 * x2
        ryy = y0 * y0 + y1 * y1 + y2 * y2
        rxy = x0 * y0 + x1 * y1 + x2 * y2

        inv9 = jnp.float32(1.0 / 9.0)
        mu_x = _col3(rx) * inv9
        mu_y = _col3(ry) * inv9
        e_xx = _col3(rxx) * inv9
        e_yy = _col3(ryy) * inv9
        e_xy = _col3(rxy) * inv9

        sigma_x = e_xx - mu_x * mu_x
        sigma_y = e_yy - mu_y * mu_y
        sigma_xy = e_xy - mu_x * mu_y

        ssim_n = (2.0 * mu_x * mu_y + C1) * (2.0 * sigma_xy + C2)
        ssim_d = (mu_x * mu_x + mu_y * mu_y + C1) * (sigma_x + sigma_y + C2)

        # EUP reciprocal + one Newton-Raphson refinement.
        r = pl.reciprocal(ssim_d, approx=True)
        r = r * (2.0 - ssim_d * r)
        o_ref[...] = (ssim_n * r).astype(o_ref.dtype)

    return kernel


def _choose_tile_bc(bc: int, h: int, w: int) -> int:
    """Largest divisor of bc fitting the VMEM budget, preferring grid >= 2."""
    per_channel_bytes = 120 * h * w + 8192   # rough f32 live set + pipeline bufs
    budget = 24 * 1024 * 1024                # conservative: fits v7x's 64 MiB VMEM
    cap = max(1, budget // per_channel_bytes)
    divisors = [t for t in range(1, bc + 1) if bc % t == 0 and t <= cap]
    multi = [t for t in divisors if bc // t >= 2]  # keep >=2 steps (v7x: 2 TCs)
    return max(multi) if multi else max(divisors)


def ssim_pallas(x: jax.Array, y: jax.Array) -> jax.Array:
    """SSIM image for NCHW inputs (== SSIM.forward). Returns (B, C, H, W)."""
    assert x.shape == y.shape and x.ndim == 4
    B, C, H, W = x.shape
    assert H >= 3 and W >= 3, "3x3 pool with reflect pad needs H, W >= 3"
    BC = B * C

    # Free reshapes (no HBM copy): flatten batch & channel into the grid axis.
    xf = x.reshape(BC, H, W)
    yf = y.reshape(BC, H, W)

    tile = _choose_tile_bc(BC, H, W)
    grid = BC // tile

    out_flat = pl.pallas_call(
        _make_ssim_kernel(H, W),
        out_shape=jax.ShapeDtypeStruct((BC, H, W), x.dtype),
        grid_spec=pltpu.PrefetchScalarGridSpec(
            num_scalar_prefetch=0,
            grid=(grid,),
            in_specs=[
                pl.BlockSpec((tile, H, W), lambda i: (i, 0, 0)),
                pl.BlockSpec((tile, H, W), lambda i: (i, 0, 0)),
            ],
            out_specs=pl.BlockSpec((tile, H, W), lambda i: (i, 0, 0)),
        ),
        compiler_params=pltpu.CompilerParams(
            dimension_semantics=("parallel",),
            vmem_limit_bytes=48 * 1024 * 1024,
        ),
    )(xf, yf)

    return out_flat.reshape(B, C, H, W)


def ssim_reference(x: jax.Array, y: jax.Array) -> jax.Array:
    """Pure-JAX reference mirroring the PyTorch module's forward()."""
    B, C, H, W = x.shape
    xp = jnp.pad(x, ((0, 0), (0, 0), (1, 1), (1, 1)), mode="reflect")
    yp = jnp.pad(y, ((0, 0), (0, 0), (1, 1), (1, 1)), mode="reflect")

    def pool(a):
        s = jnp.zeros((B, C, H, W), a.dtype)
        for di in range(3):
            for dj in range(3):
                s = s + a[:, :, di:di + H, dj:dj + W]
        return s / 9.0

    mu_x = pool(xp)
    mu_y = pool(yp)
    sigma_x = pool(xp * xp) - mu_x ** 2
    sigma_y = pool(yp * yp) - mu_y ** 2
    sigma_xy = pool(xp * yp) - mu_x * mu_y
    n = (2 * mu_x * mu_y + C1) * (2 * sigma_xy + C2)
    d = (mu_x ** 2 + mu_y ** 2 + C1) * (sigma_x + sigma_y + C2)
    return n / d


if __name__ == "__main__":
    key = jax.random.PRNGKey(0)
    kx, ky = jax.random.split(key)
    B, C, H, W = 2, 4, 16, 16
    x = jax.random.uniform(kx, (B, C, H, W), dtype=jnp.float32)
    y = jax.random.uniform(ky, (B, C, H, W), dtype=jnp.float32)

    out = ssim_pallas(x, y)
    out = jax.block_until_ready(out)

    ref = ssim_reference(x, y)
    assert out.shape == (B, C, H, W)
    max_err = float(jnp.max(jnp.abs(out - ref)))
    assert jnp.allclose(out, ref, atol=5e-5, rtol=5e-5), max_err
    print("KERNEL_OK")
</pallas_src>

<mosaic_0001>
module attributes {stable_mosaic.version = 11 : i64} {
  func.func @kernel(%arg0: i32, %arg1: memref<4x16x16xf32, #tpu.memory_space<vmem>>, %arg2: memref<4x16x16xf32, #tpu.memory_space<vmem>>, %arg3: memref<4x16x16xf32, #tpu.memory_space<vmem>>) attributes {dimension_semantics = [#tpu.dimension_semantics<parallel>], iteration_bounds = array<i64: 2>, scalar_prefetch = 0 : i64, scratch_operands = 0 : i64, tpu.core_type = #tpu.core_type<tc>, window_params = [{transform_indices = @transform_0, window_bounds = array<i64: 4, 16, 16>}, {transform_indices = @transform_1, window_bounds = array<i64: 4, 16, 16>}, {transform_indices = @transform_2, window_bounds = array<i64: 4, 16, 16>}]} {
    %c0 = arith.constant 0 : index
    %c0_0 = arith.constant 0 : index
    %c0_1 = arith.constant 0 : index
    %0 = vector.load %arg1[%c0, %c0_0, %c0_1] : memref<4x16x16xf32, #tpu.memory_space<vmem>>, vector<4x16x16xf32>
    %c0_2 = arith.constant 0 : index
    %c0_3 = arith.constant 0 : index
    %c0_4 = arith.constant 0 : index
    %1 = vector.load %arg2[%c0_2, %c0_3, %c0_4] : memref<4x16x16xf32, #tpu.memory_space<vmem>>, vector<4x16x16xf32>
    %2 = vector.extract_strided_slice %0 {offsets = [0, 1, 0], sizes = [4, 1, 16], strides = [1, 1, 1]} : vector<4x16x16xf32> to vector<4x1x16xf32>
    %3 = vector.extract_strided_slice %0 {offsets = [0, 14, 0], sizes = [4, 1, 16], strides = [1, 1, 1]} : vector<4x16x16xf32> to vector<4x1x16xf32>
    %4 = tpu.concatenate %2, %0, %3 in 1 : vector<4x1x16xf32>, vector<4x16x16xf32>, vector<4x1x16xf32> -> vector<4x18x16xf32>
    %5 = vector.extract_strided_slice %4 {offsets = [0, 0, 1], sizes = [4, 18, 1], strides = [1, 1, 1]} : vector<4x18x16xf32> to vector<4x18x1xf32>
    %6 = vector.extract_strided_slice %4 {offsets = [0, 0, 14], sizes = [4, 18, 1], strides = [1, 1, 1]} : vector<4x18x16xf32> to vector<4x18x1xf32>
    %7 = tpu.concatenate %5, %4, %6 in 2 : vector<4x18x1xf32>, vector<4x18x16xf32>, vector<4x18x1xf32> -> vector<4x18x18xf32>
    %8 = vector.extract_strided_slice %1 {offsets = [0, 1, 0], sizes = [4, 1, 16], strides = [1, 1, 1]} : vector<4x16x16xf32> to vector<4x1x16xf32>
    %9 = vector.extract_strided_slice %1 {offsets = [0, 14, 0], sizes = [4, 1, 16], strides = [1, 1, 1]} : vector<4x16x16xf32> to vector<4x1x16xf32>
    %10 = tpu.concatenate %8, %1, %9 in 1 : vector<4x1x16xf32>, vector<4x16x16xf32>, vector<4x1x16xf32> -> vector<4x18x16xf32>
    %11 = vector.extract_strided_slice %10 {offsets = [0, 0, 1], sizes = [4, 18, 1], strides = [1, 1, 1]} : vector<4x18x16xf32> to vector<4x18x1xf32>
    %12 = vector.extract_strided_slice %10 {offsets = [0, 0, 14], sizes = [4, 18, 1], strides = [1, 1, 1]} : vector<4x18x16xf32> to vector<4x18x1xf32>
    %13 = tpu.concatenate %11, %10, %12 in 2 : vector<4x18x1xf32>, vector<4x18x16xf32>, vector<4x18x1xf32> -> vector<4x18x18xf32>
    %14 = vector.extract_strided_slice %7 {offsets = [0, 0, 0], sizes = [4, 18, 16], strides = [1, 1, 1]} : vector<4x18x18xf32> to vector<4x18x16xf32>
    %15 = vector.extract_strided_slice %7 {offsets = [0, 0, 1], sizes = [4, 18, 16], strides = [1, 1, 1]} : vector<4x18x18xf32> to vector<4x18x16xf32>
    %16 = vector.extract_strided_slice %7 {offsets = [0, 0, 2], sizes = [4, 18, 16], strides = [1, 1, 1]} : vector<4x18x18xf32> to vector<4x18x16xf32>
    %17 = vector.extract_strided_slice %13 {offsets = [0, 0, 0], sizes = [4, 18, 16], strides = [1, 1, 1]} : vector<4x18x18xf32> to vector<4x18x16xf32>
    %18 = vector.extract_strided_slice %13 {offsets = [0, 0, 1], sizes = [4, 18, 16], strides = [1, 1, 1]} : vector<4x18x18xf32> to vector<4x18x16xf32>
    %19 = vector.extract_strided_slice %13 {offsets = [0, 0, 2], sizes = [4, 18, 16], strides = [1, 1, 1]} : vector<4x18x18xf32> to vector<4x18x16xf32>
    %20 = arith.addf %14, %15 : vector<4x18x16xf32>
    %21 = arith.addf %20, %16 : vector<4x18x16xf32>
    %22 = arith.addf %17, %18 : vector<4x18x16xf32>
    %23 = arith.addf %22, %19 : vector<4x18x16xf32>
    %24 = arith.mulf %14, %14 : vector<4x18x16xf32>
    %25 = arith.mulf %15, %15 : vector<4x18x16xf32>
    %26 = arith.addf %24, %25 : vector<4x18x16xf32>
    %27 = arith.mulf %16, %16 : vector<4x18x16xf32>
    %28 = arith.addf %26, %27 : vector<4x18x16xf32>
    %29 = arith.mulf %17, %17 : vector<4x18x16xf32>
    %30 = arith.mulf %18, %18 : vector<4x18x16xf32>
    %31 = arith.addf %29, %30 : vector<4x18x16xf32>
    %32 = arith.mulf %19, %19 : vector<4x18x16xf32>
    %33 = arith.addf %31, %32 : vector<4x18x16xf32>
    %34 = arith.mulf %14, %17 : vector<4x18x16xf32>
    %35 = arith.mulf %15, %18 : vector<4x18x16xf32>
    %36 = arith.addf %34, %35 : vector<4x18x16xf32>
    %37 = arith.mulf %16, %19 : vector<4x18x16xf32>
    %38 = arith.addf %36, %37 : vector<4x18x16xf32>
    %39 = vector.extract_strided_slice %21 {offsets = [0, 0, 0], sizes = [4, 16, 16], strides = [1, 1, 1]} : vector<4x18x16xf32> to vector<4x16x16xf32>
    %40 = vector.extract_strided_slice %21 {offsets = [0, 1, 0], sizes = [4, 16, 16], strides = [1, 1, 1]} : vector<4x18x16xf32> to vector<4x16x16xf32>
    %41 = arith.addf %39, %40 : vector<4x16x16xf32>
    %42 = vector.extract_strided_slice %21 {offsets = [0, 2, 0], sizes = [4, 16, 16], strides = [1, 1, 1]} : vector<4x18x16xf32> to vector<4x16x16xf32>
    %43 = arith.addf %41, %42 : vector<4x16x16xf32>
    %cst = arith.constant 0.111111112 : f32
    %44 = vector.broadcast %cst : f32 to vector<4x16x16xf32>
    %45 = arith.mulf %43, %44 : vector<4x16x16xf32>
    %46 = vector.extract_strided_slice %23 {offsets = [0, 0, 0], sizes = [4, 16, 16], strides = [1, 1, 1]} : vector<4x18x16xf32> to vector<4x16x16xf32>
    %47 = vector.extract_strided_slice %23 {offsets = [0, 1, 0], sizes = [4, 16, 16], strides = [1, 1, 1]} : vector<4x18x16xf32> to vector<4x16x16xf32>
    %48 = arith.addf %46, %47 : vector<4x16x16xf32>
    %49 = vector.extract_strided_slice %23 {offsets = [0, 2, 0], sizes = [4, 16, 16], strides = [1, 1, 1]} : vector<4x18x16xf32> to vector<4x16x16xf32>
    %50 = arith.addf %48, %49 : vector<4x16x16xf32>
    %cst_5 = arith.constant 0.111111112 : f32
    %51 = vector.broadcast %cst_5 : f32 to vector<4x16x16xf32>
    %52 = arith.mulf %50, %51 : vector<4x16x16xf32>
    %53 = vector.extract_strided_slice %28 {offsets = [0, 0, 0], sizes = [4, 16, 16], strides = [1, 1, 1]} : vector<4x18x16xf32> to vector<4x16x16xf32>
    %54 = vector.extract_strided_slice %28 {offsets = [0, 1, 0], sizes = [4, 16, 16], strides = [1, 1, 1]} : vector<4x18x16xf32> to vector<4x16x16xf32>
    %55 = arith.addf %53, %54 : vector<4x16x16xf32>
    %56 = vector.extract_strided_slice %28 {offsets = [0, 2, 0], sizes = [4, 16, 16], strides = [1, 1, 1]} : vector<4x18x16xf32> to vector<4x16x16xf32>
    %57 = arith.addf %55, %56 : vector<4x16x16xf32>
    %cst_6 = arith.constant 0.111111112 : f32
    %58 = vector.broadcast %cst_6 : f32 to vector<4x16x16xf32>
    %59 = arith.mulf %57, %58 : vector<4x16x16xf32>
    %60 = vector.extract_strided_slice %33 {offsets = [0, 0, 0], sizes = [4, 16, 16], strides = [1, 1, 1]} : vector<4x18x16xf32> to vector<4x16x16xf32>
    %61 = vector.extract_strided_slice %33 {offsets = [0, 1, 0], sizes = [4, 16, 16], strides = [1, 1, 1]} : vector<4x18x16xf32> to vector<4x16x16xf32>
    %62 = arith.addf %60, %61 : vector<4x16x16xf32>
    %63 = vector.extract_strided_slice %33 {offsets = [0, 2, 0], sizes = [4, 16, 16], strides = [1, 1, 1]} : vector<4x18x16xf32> to vector<4x16x16xf32>
    %64 = arith.addf %62, %63 : vector<4x16x16xf32>
    %cst_7 = arith.constant 0.111111112 : f32
    %65 = vector.broadcast %cst_7 : f32 to vector<4x16x16xf32>
    %66 = arith.mulf %64, %65 : vector<4x16x16xf32>
    %67 = vector.extract_strided_slice %38 {offsets = [0, 0, 0], sizes = [4, 16, 16], strides = [1, 1, 1]} : vector<4x18x16xf32> to vector<4x16x16xf32>
    %68 = vector.extract_strided_slice %38 {offsets = [0, 1, 0], sizes = [4, 16, 16], strides = [1, 1, 1]} : vector<4x18x16xf32> to vector<4x16x16xf32>
    %69 = arith.addf %67, %68 : vector<4x16x16xf32>
    %70 = vector.extract_strided_slice %38 {offsets = [0, 2, 0], sizes = [4, 16, 16], strides = [1, 1, 1]} : vector<4x18x16xf32> to vector<4x16x16xf32>
    %71 = arith.addf %69, %70 : vector<4x16x16xf32>
    %cst_8 = arith.constant 0.111111112 : f32
    %72 = vector.broadcast %cst_8 : f32 to vector<4x16x16xf32>
    %73 = arith.mulf %71, %72 : vector<4x16x16xf32>
    %74 = arith.mulf %45, %45 : vector<4x16x16xf32>
    %75 = arith.subf %59, %74 : vector<4x16x16xf32>
    %76 = arith.mulf %52, %52 : vector<4x16x16xf32>
    %77 = arith.subf %66, %76 : vector<4x16x16xf32>
    %78 = arith.mulf %45, %52 : vector<4x16x16xf32>
    %79 = arith.subf %73, %78 : vector<4x16x16xf32>
    %cst_9 = arith.constant 2.000000e+00 : f32
    %80 = vector.broadcast %cst_9 : f32 to vector<4x16x16xf32>
    %81 = arith.mulf %80, %45 : vector<4x16x16xf32>
    %82 = arith.mulf %81, %52 : vector<4x16x16xf32>
    %cst_10 = arith.constant 9.99999974E-5 : f32
    %83 = vector.broadcast %cst_10 : f32 to vector<4x16x16xf32>
    %84 = arith.addf %82, %83 : vector<4x16x16xf32>
    %cst_11 = arith.constant 2.000000e+00 : f32
    %85 = vector.broadcast %cst_11 : f32 to vector<4x16x16xf32>
    %86 = arith.mulf %85, %79 : vector<4x16x16xf32>
    %cst_12 = arith.constant 8.99999984E-4 : f32
    %87 = vector.broadcast %cst_12 : f32 to vector<4x16x16xf32>
    %88 = arith.addf %86, %87 : vector<4x16x16xf32>
    %89 = arith.mulf %84, %88 : vector<4x16x16xf32>
    %90 = arith.mulf %45, %45 : vector<4x16x16xf32>
    %91 = arith.mulf %52, %52 : vector<4x16x16xf32>
    %92 = arith.addf %90, %91 : vector<4x16x16xf32>
    %cst_13 = arith.constant 9.99999974E-5 : f32
    %93 = vector.broadcast %cst_13 : f32 to vector<4x16x16xf32>
    %94 = arith.addf %92, %93 : vector<4x16x16xf32>
    %95 = arith.addf %75, %77 : vector<4x16x16xf32>
    %cst_14 = arith.constant 8.99999984E-4 : f32
    %96 = vector.broadcast %cst_14 : f32 to vector<4x16x16xf32>
    %97 = arith.addf %95, %96 : vector<4x16x16xf32>
    %98 = arith.mulf %94, %97 : vector<4x16x16xf32>
    %99 = tpu.reciprocal %98 {approx = true} : vector<4x16x16xf32> -> vector<4x16x16xf32>
    %100 = arith.mulf %98, %99 : vector<4x16x16xf32>
    %cst_15 = arith.constant 2.000000e+00 : f32
    %101 = vector.broadcast %cst_15 : f32 to vector<4x16x16xf32>
    %102 = arith.subf %101, %100 : vector<4x16x16xf32>
    %103 = arith.mulf %99, %102 : vector<4x16x16xf32>
    %104 = arith.mulf %89, %103 : vector<4x16x16xf32>
    %c0_16 = arith.constant 0 : index
    %c0_17 = arith.constant 0 : index
    %c0_18 = arith.constant 0 : index
    %105 = vector.load %arg3[%c0_16, %c0_17, %c0_18] : memref<4x16x16xf32, #tpu.memory_space<vmem>>, vector<4x16x16xf32>
    tpu.vector_store %arg3[%c0_16, %c0_17, %c0_18], %104 {strides = array<i32>} : memref<4x16x16xf32, #tpu.memory_space<vmem>>, vector<4x16x16xf32>,
    return
  }
  func.func @transform_0(%arg0: i32) -> (i32, i32, i32) {
    %c0_i32 = arith.constant 0 : i32
    %c0_i32_0 = arith.constant 0 : i32
    %c0_i32_1 = arith.constant 0 : i32
    return %arg0, %c0_i32, %c0_i32_0 : i32, i32, i32
  }
  func.func @transform_1(%arg0: i32) -> (i32, i32, i32) {
    %c0_i32 = arith.constant 0 : i32
    %c0_i32_0 = arith.constant 0 : i32
    %c0_i32_1 = arith.constant 0 : i32
    return %arg0, %c0_i32, %c0_i32_0 : i32, i32, i32
  }
  func.func @transform_2(%arg0: i32) -> (i32, i32, i32) {
    %c0_i32 = arith.constant 0 : i32
    %c0_i32_0 = arith.constant 0 : i32
    %c0_i32_1 = arith.constant 0 : i32
    return %arg0, %c0_i32, %c0_i32_0 : i32, i32, i32
  }
}

</mosaic_0001>

<llo_original>
// kernel: tpu_custom_call.1
$region0: #{tpu_custom_call.1}
  #allocation0 [shape = 'u32[]', space=smem, size = 0x4, offset = 0x4, fixed_abs, tag = 'smem constant byte address 0x4 - core index']
  #allocation1 [shape = 'u32[144,128]{1,0:T(1,128)}', space=vmem, size = 0x12000, scoped, tag = 'internal scratch']
  %s0 = inlined_call_operand.hbm [shape: f32[8,16,16], index: 0, kind: input, shape index: {}]
  %s1 = inlined_call_operand.hbm [shape: f32[8,16,16], index: 1, kind: input, shape index: {}]
  %s2 = inlined_call_operand.hbm [shape: f32[8,16,16], index: 2, kind: output, shape index: {}]
  %s3 = sld [smem:[#allocation0]]
  $region49: #{tpu_custom_call.1} parent=0
    _
  %s5 = ssub.s32 1, %s3
  %s6 = scalar_select 0, %s5, %s3
  $region1: #{tpu_custom_call.1} parent=0
    #allocation2 [shape = 'u8[65536]{0}', space=vmem, size = 0x10000, scoped, tag = 'input window, operand 0']
    #allocation3 [shape = 's32[2]{0}', space=sflag, size = 0x8, scoped, tag = 'scoped memory for tpu_custom_call.1']
    #allocation4 [shape = 's32[2]{0}', space=sflag, size = 0x8, scoped, tag = 'scoped memory for tpu_custom_call.1']
    #allocation5 [shape = 'u8[65536]{0}', space=vmem, size = 0x10000, scoped, tag = 'input window, operand 1']
    #allocation6 [shape = 's32[2]{0}', space=sflag, size = 0x8, scoped, tag = 'scoped memory for tpu_custom_call.1']
    #allocation7 [shape = 'u8[65536]{0}', space=vmem, size = 0x10000, scoped, tag = 'output window, operand 0']
    %7 = vsyncpa [#allocation3], 0
    %s8 = scalar_lea.sflag [#allocation3], 1
    %9 = vsyncpa %s8, 0
    %10 = vsyncpa [#allocation6], 0
    %s11 = scalar_lea.sflag [#allocation6], 1
    %12 = vsyncpa %s11, 0
    %13 = vsyncpa [#allocation4], 0
    %s14 = scalar_lea.sflag [#allocation4], 1
    %15 = vsyncpa %s14, 0
    loop: start=0, step=1, limit=4
    $region2: #{tpu_custom_call.1} parent=1 // loop_pre_header
      _
    $region3: #{tpu_custom_call.1} parent=1 // loop_header
      %s17 = sphi 0, %s21
      %p18 = scmp.ge.s32.totalorder %s17, 4
      %s27 = sphi 0, %s29
      %s30 = sphi 0, %s27
      %s31 = sphi 0, %s30
      %s47 = sphi 0, %s31
      %s53 = sphi 0, %s55
      %s56 = sphi 0, %s53
      %s57 = sphi 0, %s56
      %s73 = sphi 0, %s57
      %s79 = sphi 0, %s81
      %s82 = sphi 0, %s79
      %s83 = sphi 0, %s82
      %s99 = sphi 0, %s83
    $region4: #{tpu_custom_call.1} parent=1 // loop_header_branch
      %20 = sbr.rel (%p18) target = $region8
    $region5: #{tpu_custom_call.1} parent=1 // loop_body
      %s22 = ssub.s32 %s17, 1
      %s23 = ssub.s32 %s17, 2
      %s24 = sadd.s32 %s17, 1
      %s25 = ssub.s32 %s17, %s24
      %p26 = scmp.eq.s32.totalorder %s25, 0
      %s28 = sadd.s32 %s27, 1
      %s29 = scalar_select %p26, %s27, %s28
      %p32 = pneg %p26
      %p33 = scmp.eq.s32.totalorder %s17, 1
      %p34 = por %p32, %p33
      %p35 = scmp.ne.s32.totalorder %s27, %s30
      %p36 = scmp.eq.s32.totalorder %s17, 0
      %p37 = por %p35, %p36
      %p38 = scmp.ne.s32.totalorder %s27, %s30
      %p39 = scmp.eq.s32.totalorder %s22, 1
      %p40 = por %p38, %p39
      %p41 = scmp.ne.s32.totalorder %s30, %s31
      %p42 = scmp.eq.s32.totalorder %s22, 0
      %p43 = por %p41, %p42
      %p44 = scmp.ne.s32.totalorder %s30, %s31
      %p45 = scmp.eq.s32.totalorder %s23, 1
      %p46 = por %p44, %p45
      %p48 = scmp.ne.s32.totalorder %s31, %s47
      %p49 = scmp.eq.s32.totalorder %s23, 0
      %p50 = por %p48, %p49
      %s51 = ssub.s32 %s17, %s24
      %p52 = scmp.eq.s32.totalorder %s51, 0
      %s54 = sadd.s32 %s53, 1
      %s55 = scalar_select %p52, %s53, %s54
      %p58 = pneg %p52
      %p59 = scmp.eq.s32.totalorder %s17, 1
      %p60 = por %p58, %p59
      %p61 = scmp.ne.s32.totalorder %s53, %s56
      %p62 = scmp.eq.s32.totalorder %s17, 0
      %p63 = por %p61, %p62
      %p64 = scmp.ne.s32.totalorder %s53, %s56
      %p65 = scmp.eq.s32.totalorder %s22, 1
      %p66 = por %p64, %p65
      %p67 = scmp.ne.s32.totalorder %s56, %s57
      %p68 = scmp.eq.s32.totalorder %s22, 0
      %p69 = por %p67, %p68
      %p70 = scmp.ne.s32.totalorder %s56, %s57
      %p71 = scmp.eq.s32.totalorder %s23, 1
      %p72 = por %p70, %p71
      %p74 = scmp.ne.s32.totalorder %s57, %s73
      %p75 = scmp.eq.s32.totalorder %s23, 0
      %p76 = por %p74, %p75
      %s77 = ssub.s32 %s17, %s24
      %p78 = scmp.eq.s32.totalorder %s77, 0
      %s80 = sadd.s32 %s79, 1
      %s81 = scalar_select %p78, %s79, %s80
      %p84 = pneg %p78
      %p85 = scmp.eq.s32.totalorder %s17, 1
      %p86 = por %p84, %p85
      %p87 = scmp.ne.s32.totalorder %s79, %s82
      %p88 = scmp.eq.s32.totalorder %s17, 0
      %p89 = por %p87, %p88
      %p90 = scmp.ne.s32.totalorder %s79, %s82
      %p91 = scmp.eq.s32.totalorder %s22, 1
      %p92 = por %p90, %p91
      %p93 = scmp.ne.s32.totalorder %s82, %s83
      %p94 = scmp.eq.s32.totalorder %s22, 0
      %p95 = por %p93, %p94
      %p96 = scmp.ne.s32.totalorder %s82, %s83
      %p97 = scmp.eq.s32.totalorder %s23, 1
      %p98 = por %p96, %p97
      %p100 = scmp.ne.s32.totalorder %s83, %s99
      %p101 = scmp.eq.s32.totalorder %s23, 0
      %p102 = por %p100, %p101
      %p103 = scmp.le.s32.totalorder 1, %s17
      %p104 = scmp.lt.s32.totalorder %s17, 3
      %p105 = pnand %p103, %p104
      %p106 = pneg %p105
      // Predicated region
      $region9: #{tpu_custom_call.1} parent=5 // pred_check
        _
      $region10: #{tpu_custom_call.1} parent=5 // pred_check_branch
        %108 = sbr.rel (%p105) target = $region12
      $region11: #{tpu_custom_call.1} parent=5 // pred_region
        %s109 = ssub.s32 %s17, 1
      $region12: #{tpu_custom_call.1} parent=5 // pred_fallthru
        _
      %p110 = scmp.lt.s32.totalorder %s17, 2
      // Predicated region
      $region13: #{tpu_custom_call.1} parent=5 // pred_check
        %p111 = pneg %p110
      $region14: #{tpu_custom_call.1} parent=5 // pred_check_branch
        %113 = sbr.rel (%p111) target = $region16
      $region15: #{tpu_custom_call.1} parent=5 // pred_region
        // Predicated region
        $region17: #{tpu_custom_call.1} parent=15 // pred_check
          %p114 = pneg %p37
        $region18: #{tpu_custom_call.1} parent=15 // pred_check_branch
          %116 = sbr.rel (%p114) target = $region20
        $region19: #{tpu_custom_call.1} parent=15 // pred_region
          %s117 = sand.u32 %s27, 1
          %s118 = scalar_lea.sflag [#allocation3], %s117
          %s119 = sand.u32 %s27, 1
          %s120 = smul.addr %s119, 64
          %s121 = scalar_lea.vmem [#allocation2], %s120
          %s122 = smul.u32 4, %s17
          %s124 = ssub.s32 1024, 1024
          %125 = vsyncadd %s118, %s124
          %s126 = smul.addr %s122, 2
          %s127 = smul.addr %s126, 128
          %s128 = scalar_lea.hbm %s0, %s127
          %s129 = sshll.u32 %s121, 4
          %s130 = int_to_ptr.vmem [resolvable:$true] %s129
          %135 = dma.hbm_to_vmem [thread:$0]  %s128, 1024, %s130, %s118, 128, 128, 8
        $region20: #{tpu_custom_call.1} parent=15 // pred_fallthru
          _
        // Predicated region
        $region21: #{tpu_custom_call.1} parent=15 // pred_check
          %p136 = pneg %p63
        $region22: #{tpu_custom_call.1} parent=15 // pred_check_branch
          %138 = sbr.rel (%p136) target = $region24
        $region23: #{tpu_custom_call.1} parent=15 // pred_region
          %s139 = sand.u32 %s53, 1
          %s140 = scalar_lea.sflag [#allocation6], %s139
          %s141 = sand.u32 %s53, 1
          %s142 = smul.addr %s141, 64
          %s143 = scalar_lea.vmem [#allocation5], %s142
          %s144 = smul.u32 4, %s17
          %s146 = ssub.s32 1024, 1024
          %147 = vsyncadd %s140, %s146
          %s148 = smul.addr %s144, 2
          %s149 = smul.addr %s148, 128
          %s150 = scalar_lea.hbm %s1, %s149
          %s151 = sshll.u32 %s143, 4
          %s152 = int_to_ptr.vmem [resolvable:$true] %s151
          %157 = dma.hbm_to_vmem [thread:$0]  %s150, 1024, %s152, %s140, 128, 128, 8
        $region24: #{tpu_custom_call.1} parent=15 // pred_fallthru
          _
      $region16: #{tpu_custom_call.1} parent=5 // pred_fallthru
        _
      %p158 = scmp.le.s32.totalorder 1, %s17
      %p159 = scmp.lt.s32.totalorder %s17, 3
      %p160 = pnand %p158, %p159
      %p161 = pneg %p160
      // Predicated region
      $region25: #{tpu_custom_call.1} parent=5 // pred_check
        _
      $region26: #{tpu_custom_call.1} parent=5 // pred_check_branch
        %163 = sbr.rel (%p160) target = $region28
      $region27: #{tpu_custom_call.1} parent=5 // pred_region
        %s164 = ssub.s32 %s17, 1
        %s165 = sand.u32 %s30, 1
        %s166 = scalar_lea.sflag [#allocation3], %s165
        %s167 = sand.u32 %s30, 1
        %s168 = smul.addr %s167, 64
        %s169 = scalar_lea.vmem [#allocation2], %s168
        // Predicated region
        $region29: #{tpu_custom_call.1} parent=27 // pred_check
          %p170 = pneg %p43
        $region30: #{tpu_custom_call.1} parent=27 // pred_check_branch
          %172 = sbr.rel (%p170) target = $region32
        $region31: #{tpu_custom_call.1} parent=27 // pred_region
          %173 = dma.done %s166, 1024
        $region32: #{tpu_custom_call.1} parent=27 // pred_fallthru
          _
        %s174 = sand.u32 %s56, 1
        %s175 = scalar_lea.sflag [#allocation6], %s174
        %s176 = sand.u32 %s56, 1
        %s177 = smul.addr %s176, 64
        %s178 = scalar_lea.vmem [#allocation5], %s177
        // Predicated region
        $region33: #{tpu_custom_call.1} parent=27 // pred_check
          %p179 = pneg %p69
        $region34: #{tpu_custom_call.1} parent=27 // pred_check_branch
          %181 = sbr.rel (%p179) target = $region36
        $region35: #{tpu_custom_call.1} parent=27 // pred_region
          %182 = dma.done %s175, 1024
        $region36: #{tpu_custom_call.1} parent=27 // pred_fallthru
          _
        %s183 = sand.u32 %s30, 1
        %s184 = scalar_lea.sflag [#allocation3], %s183
        %s185 = sand.u32 %s30, 1
        %s186 = smul.addr %s185, 64
        %s187 = scalar_lea.vmem [#allocation2], %s186
        %p188 = pneg %p43
        %p189 = pneg %p40
        %s190 = sand.u32 %s56, 1
        %s191 = scalar_lea.sflag [#allocation6], %s190
        %s192 = sand.u32 %s56, 1
        %s193 = smul.addr %s192, 64
        %s194 = scalar_lea.vmem [#allocation5], %s193
        %p195 = pneg %p69
        %p196 = pneg %p66
        %p197 = pneg %p95
        %p198 = pneg %p92
        %s199 = sand.u32 %s82, 1
        %s200 = scalar_lea.sflag [#allocation4], %s199
        %s201 = sand.u32 %s82, 1
        %s202 = smul.addr %s201, 64
        %s203 = scalar_lea.vmem [#allocation7], %s202
        %s204 = smul.u32 4, %s22
        %s205 = smul.u32 4, %s22
        %s206 = smul.u32 4, %s22
        %v207 = vld [vmem:[%s169] sm:$0xff]
        %v208 = vld [vmem:[%s169 + $0x8] sm:$0xff]
        %v209 = vld [vmem:[%s169 + $0x10] sm:$0xff]
        %v210 = vld [vmem:[%s169 + $0x18] sm:$0xff]
        %v211 = vld [vmem:[%s169 + $0x20] sm:$0xff]
        %v212 = vld [vmem:[%s169 + $0x28] sm:$0xff]
        %v213 = vld [vmem:[%s169 + $0x30] sm:$0xff]
        %v214 = vld [vmem:[%s169 + $0x38] sm:$0xff]
        %v215 = vld [vmem:[%s178] sm:$0xff]
        %v216 = vld [vmem:[%s178 + $0x8] sm:$0xff]
        %v217 = vld [vmem:[%s178 + $0x10] sm:$0xff]
        %v218 = vld [vmem:[%s178 + $0x18] sm:$0xff]
        %v219 = vld [vmem:[%s178 + $0x20] sm:$0xff]
        %v220 = vld [vmem:[%s178 + $0x28] sm:$0xff]
        %v221 = vld [vmem:[%s178 + $0x30] sm:$0xff]
        %v222 = vld [vmem:[%s178 + $0x38] sm:$0xff]
        %v227 = vrot.slane %v207, 1
        %v228 = vrot.slane %v209, 1
        %v229 = vrot.slane %v211, 1
        %v230 = vrot.slane %v213, 1
        %vm239 = vcmask 1040384
        %v240 = vrot.slane %v207, 7
        %v241 = vrot.slane %v208, 7
        %v242 = vsel %vm239, %v240, %v241
        %v243 = vrot.slane %v209, 7
        %v244 = vrot.slane %v210, 7
        %v245 = vsel %vm239, %v243, %v244
        %v246 = vrot.slane %v211, 7
        %v247 = vrot.slane %v212, 7
        %v248 = vsel %vm239, %v246, %v247
        %v249 = vrot.slane %v213, 7
        %v250 = vrot.slane %v214, 7
        %v251 = vsel %vm239, %v249, %v250
        %v260 = vrot.slane %v208, 5
        %v261 = vrot.slane %v210, 5
        %v262 = vrot.slane %v212, 5
        %v263 = vrot.slane %v214, 5
        %v268 = vsel %vm239, %v227, %v240
        %v269 = vsel %vm239, %v228, %v243
        %v270 = vsel %vm239, %v229, %v246
        %v271 = vsel %vm239, %v230, %v249
        %v272 = vsel %vm239, %v241, %v260
        %v273 = vsel %vm239, %v244, %v261
        %v274 = vsel %vm239, %v247, %v262
        %v275 = vsel %vm239, %v250, %v263
        %284 = vrot.lane.b32.xlu0 %v268, 127
        %v285 = vpop.permute.xlu0 %284
        %286 = vrot.lane.b32.xlu0 %v242, 127
        %v287 = vpop.permute.xlu0 %286
        %288 = vrot.lane.b32.xlu0 %v272, 127
        %v289 = vpop.permute.xlu0 %288
        %290 = vrot.lane.b32.xlu0 %v269, 127
        %v291 = vpop.permute.xlu0 %290
        %292 = vrot.lane.b32.xlu0 %v245, 127
        %v293 = vpop.permute.xlu0 %292
        %294 = vrot.lane.b32.xlu0 %v273, 127
        %v295 = vpop.permute.xlu0 %294
        %296 = vrot.lane.b32.xlu0 %v270, 127
        %v297 = vpop.permute.xlu0 %296
        %298 = vrot.lane.b32.xlu0 %v248, 127
        %v299 = vpop.permute.xlu0 %298
        %300 = vrot.lane.b32.xlu0 %v274, 127
        %v301 = vpop.permute.xlu0 %300
        %302 = vrot.lane.b32.xlu0 %v271, 127
        %v303 = vpop.permute.xlu0 %302
        %304 = vrot.lane.b32.xlu0 %v251, 127
        %v305 = vpop.permute.xlu0 %304
        %306 = vrot.lane.b32.xlu0 %v275, 127
        %v307 = vpop.permute.xlu0 %306
        %320 = vrot.lane.b32.xlu0 %v268, 1
        %v321 = vpop.permute.xlu0 %320
        %322 = vrot.lane.b32.xlu0 %v242, 1
        %v323 = vpop.permute.xlu0 %322
        %324 = vrot.lane.b32.xlu0 %v272, 1
        %v325 = vpop.permute.xlu0 %324
        %326 = vrot.lane.b32.xlu0 %v269, 1
        %v327 = vpop.permute.xlu0 %326
        %328 = vrot.lane.b32.xlu0 %v245, 1
        %v329 = vpop.permute.xlu0 %328
        %330 = vrot.lane.b32.xlu0 %v273, 1
        %v331 = vpop.permute.xlu0 %330
        %332 = vrot.lane.b32.xlu0 %v270, 1
        %v333 = vpop.permute.xlu0 %332
        %334 = vrot.lane.b32.xlu0 %v248, 1
        %v335 = vpop.permute.xlu0 %334
        %336 = vrot.lane.b32.xlu0 %v274, 1
        %v337 = vpop.permute.xlu0 %336
        %338 = vrot.lane.b32.xlu0 %v271, 1
        %v339 = vpop.permute.xlu0 %338
        %340 = vrot.lane.b32.xlu0 %v251, 1
        %v341 = vpop.permute.xlu0 %340
        %342 = vrot.lane.b32.xlu0 %v275, 1
        %v343 = vpop.permute.xlu0 %342
        %356 = vrot.lane.b32.xlu0 %v268, 3
        %v357 = vpop.permute.xlu0 %356
        %358 = vrot.lane.b32.xlu0 %v242, 3
        %v359 = vpop.permute.xlu0 %358
        %360 = vrot.lane.b32.xlu0 %v272, 3
        %v361 = vpop.permute.xlu0 %360
        %362 = vrot.lane.b32.xlu0 %v269, 3
        %v363 = vpop.permute.xlu0 %362
        %364 = vrot.lane.b32.xlu0 %v245, 3
        %v365 = vpop.permute.xlu0 %364
        %366 = vrot.lane.b32.xlu0 %v273, 3
        %v367 = vpop.permute.xlu0 %366
        %368 = vrot.lane.b32.xlu0 %v270, 3
        %v369 = vpop.permute.xlu0 %368
        %370 = vrot.lane.b32.xlu0 %v248, 3
        %v371 = vpop.permute.xlu0 %370
        %372 = vrot.lane.b32.xlu0 %v274, 3
        %v373 = vpop.permute.xlu0 %372
        %374 = vrot.lane.b32.xlu0 %v271, 3
        %v375 = vpop.permute.xlu0 %374
        %376 = vrot.lane.b32.xlu0 %v251, 3
        %v377 = vpop.permute.xlu0 %376
        %378 = vrot.lane.b32.xlu0 %v275, 3
        %v379 = vpop.permute.xlu0 %378
        %vm392 = vcmask 7168
        %v393 = vsel %vm392, %v285, %v321
        %v394 = vsel %vm392, %v287, %v323
        %v395 = vsel %vm392, %v289, %v325
        %v396 = vsel %vm392, %v291, %v327
        %v397 = vsel %vm392, %v293, %v329
        %v398 = vsel %vm392, %v295, %v331
        %v399 = vsel %vm392, %v297, %v333
        %v400 = vsel %vm392, %v299, %v335
        %v401 = vsel %vm392, %v301, %v337
        %v402 = vsel %vm392, %v303, %v339
        %v403 = vsel %vm392, %v305, %v341
        %v404 = vsel %vm392, %v307, %v343
        %vm405 = vcmask 138240
        %v406 = vsel %vm405, %v393, %v357
        %v407 = vsel %vm405, %v394, %v359
        %v408 = vsel %vm405, %v395, %v361
        %v409 = vsel %vm405, %v396, %v363
        %v410 = vsel %vm405, %v397, %v365
        %v411 = vsel %vm405, %v398, %v367
        %v412 = vsel %vm405, %v399, %v369
        %v413 = vsel %vm405, %v400, %v371
        %v414 = vsel %vm405, %v401, %v373
        %v415 = vsel %vm405, %v402, %v375
        %v416 = vsel %vm405, %v403, %v377
        %v417 = vsel %vm405, %v404, %v379
        %v422 = vrot.slane %v215, 1
        %v423 = vrot.slane %v217, 1
        %v424 = vrot.slane %v219, 1
        %v425 = vrot.slane %v221, 1
        %v434 = vrot.slane %v215, 7
        %v435 = vrot.slane %v216, 7
        %v436 = vsel %vm239, %v434, %v435
        %v437 = vrot.slane %v217, 7
        %v438 = vrot.slane %v218, 7
        %v439 = vsel %vm239, %v437, %v438
        %v440 = vrot.slane %v219, 7
        %v441 = vrot.slane %v220, 7
        %v442 = vsel %vm239, %v440, %v441
        %v443 = vrot.slane %v221, 7
        %v444 = vrot.slane %v222, 7
        %v445 = vsel %vm239, %v443, %v444
        %v454 = vrot.slane %v216, 5
        %v455 = vrot.slane %v218, 5
        %v456 = vrot.slane %v220, 5
        %v457 = vrot.slane %v222, 5
        %v462 = vsel %vm239, %v422, %v434
        %v463 = vsel %vm239, %v423, %v437
        %v464 = vsel %vm239, %v424, %v440
        %v465 = vsel %vm239, %v425, %v443
        %v466 = vsel %vm239, %v435, %v454
        %v467 = vsel %vm239, %v438, %v455
        %v468 = vsel %vm239, %v441, %v456
        %v469 = vsel %vm239, %v444, %v457
        %478 = vrot.lane.b32.xlu0 %v462, 127
        %v479 = vpop.permute.xlu0 %478
        %480 = vrot.lane.b32.xlu0 %v436, 127
        %v481 = vpop.permute.xlu0 %480
        %482 = vrot.lane.b32.xlu0 %v466, 127
        %v483 = vpop.permute.xlu0 %482
        %484 = vrot.lane.b32.xlu0 %v463, 127
        %v485 = vpop.permute.xlu0 %484
        %486 = vrot.lane.b32.xlu0 %v439, 127
        %v487 = vpop.permute.xlu0 %486
        %488 = vrot.lane.b32.xlu0 %v467, 127
        %v489 = vpop.permute.xlu0 %488
        %490 = vrot.lane.b32.xlu0 %v464, 127
        %v491 = vpop.permute.xlu0 %490
        %492 = vrot.lane.b32.xlu0 %v442, 127
        %v493 = vpop.permute.xlu0 %492
        %494 = vrot.lane.b32.xlu0 %v468, 127
        %v495 = vpop.permute.xlu0 %494
        %496 = vrot.lane.b32.xlu0 %v465, 127
        %v497 = vpop.permute.xlu0 %496
        %498 = vrot.lane.b32.xlu0 %v445, 127
        %v499 = vpop.permute.xlu0 %498
        %500 = vrot.lane.b32.xlu0 %v469, 127
        %v501 = vpop.permute.xlu0 %500
        %514 = vrot.lane.b32.xlu0 %v462, 1
        %v515 = vpop.permute.xlu0 %514
        %516 = vrot.lane.b32.xlu0 %v436, 1
        %v517 = vpop.permute.xlu0 %516
        %518 = vrot.lane.b32.xlu0 %v466, 1
        %v519 = vpop.permute.xlu0 %518
        %520 = vrot.lane.b32.xlu0 %v463, 1
        %v521 = vpop.permute.xlu0 %520
        %522 = vrot.lane.b32.xlu0 %v439, 1
        %v523 = vpop.permute.xlu0 %522
        %524 = vrot.lane.b32.xlu0 %v467, 1
        %v525 = vpop.permute.xlu0 %524
        %526 = vrot.lane.b32.xlu0 %v464, 1
        %v527 = vpop.permute.xlu0 %526
        %528 = vrot.lane.b32.xlu0 %v442, 1
        %v529 = vpop.permute.xlu0 %528
        %530 = vrot.lane.b32.xlu0 %v468, 1
        %v531 = vpop.permute.xlu0 %530
        %532 = vrot.lane.b32.xlu0 %v465, 1
        %v533 = vpop.permute.xlu0 %532
        %534 = vrot.lane.b32.xlu0 %v445, 1
        %v535 = vpop.permute.xlu0 %534
        %536 = vrot.lane.b32.xlu0 %v469, 1
        %v537 = vpop.permute.xlu0 %536
        %550 = vrot.lane.b32.xlu0 %v462, 3
        %v551 = vpop.permute.xlu0 %550
        %552 = vrot.lane.b32.xlu0 %v436, 3
        %v553 = vpop.permute.xlu0 %552
        %554 = vrot.lane.b32.xlu0 %v466, 3
        %v555 = vpop.permute.xlu0 %554
        %556 = vrot.lane.b32.xlu0 %v463, 3
        %v557 = vpop.permute.xlu0 %556
        %558 = vrot.lane.b32.xlu0 %v439, 3
        %v559 = vpop.permute.xlu0 %558
        %560 = vrot.lane.b32.xlu0 %v467, 3
        %v561 = vpop.permute.xlu0 %560
        %562 = vrot.lane.b32.xlu0 %v464, 3
        %v563 = vpop.permute.xlu0 %562
        %564 = vrot.lane.b32.xlu0 %v442, 3
        %v565 = vpop.permute.xlu0 %564
        %566 = vrot.lane.b32.xlu0 %v468, 3
        %v567 = vpop.permute.xlu0 %566
        %568 = vrot.lane.b32.xlu0 %v465, 3
        %v569 = vpop.permute.xlu0 %568
        %570 = vrot.lane.b32.xlu0 %v445, 3
        %v571 = vpop.permute.xlu0 %570
        %572 = vrot.lane.b32.xlu0 %v469, 3
        %v573 = vpop.permute.xlu0 %572
        %v586 = vsel %vm392, %v479, %v515
        %v587 = vsel %vm392, %v481, %v517
        %v588 = vsel %vm392, %v483, %v519
        %v589 = vsel %vm392, %v485, %v521
        %v590 = vsel %vm392, %v487, %v523
        %v591 = vsel %vm392, %v489, %v525
        %v592 = vsel %vm392, %v491, %v527
        %v593 = vsel %vm392, %v493, %v529
        %v594 = vsel %vm392, %v495, %v531
        %v595 = vsel %vm392, %v497, %v533
        %v596 = vsel %vm392, %v499, %v535
        %v597 = vsel %vm392, %v501, %v537
        %v598 = vsel %vm405, %v586, %v551
        %v599 = vsel %vm405, %v587, %v553
        %v600 = vsel %vm405, %v588, %v555
        %v601 = vsel %vm405, %v589, %v557
        %v602 = vsel %vm405, %v590, %v559
        %v603 = vsel %vm405, %v591, %v561
        %v604 = vsel %vm405, %v592, %v563
        %v605 = vsel %vm405, %v593, %v565
        %v606 = vsel %vm405, %v594, %v567
        %v607 = vsel %vm405, %v595, %v569
        %v608 = vsel %vm405, %v596, %v571
        %v609 = vsel %vm405, %v597, %v573
        %622 = vrot.lane.b32.xlu0 %v406, 127
        %v623 = vpop.permute.xlu0 %622
        %624 = vrot.lane.b32.xlu0 %v407, 127
        %v625 = vpop.permute.xlu0 %624
        %626 = vrot.lane.b32.xlu0 %v408, 127
        %v627 = vpop.permute.xlu0 %626
        %628 = vrot.lane.b32.xlu0 %v409, 127
        %v629 = vpop.permute.xlu0 %628
        %630 = vrot.lane.b32.xlu0 %v410, 127
        %v631 = vpop.permute.xlu0 %630
        %632 = vrot.lane.b32.xlu0 %v411, 127
        %v633 = vpop.permute.xlu0 %632
        %634 = vrot.lane.b32.xlu0 %v412, 127
        %v635 = vpop.permute.xlu0 %634
        %636 = vrot.lane.b32.xlu0 %v413, 127
        %v637 = vpop.permute.xlu0 %636
        %638 = vrot.lane.b32.xlu0 %v414, 127
        %v639 = vpop.permute.xlu0 %638
        %640 = vrot.lane.b32.xlu0 %v415, 127
        %v641 = vpop.permute.xlu0 %640
        %642 = vrot.lane.b32.xlu0 %v416, 127
        %v643 = vpop.permute.xlu0 %642
        %644 = vrot.lane.b32.xlu0 %v417, 127
        %v645 = vpop.permute.xlu0 %644
        %v658 = vadd.f32 %v406, %v623
        %v659 = vadd.f32 %v407, %v625
        %v660 = vadd.f32 %v408, %v627
        %v661 = vadd.f32 %v409, %v629
        %v662 = vadd.f32 %v410, %v631
        %v663 = vadd.f32 %v411, %v633
        %v664 = vadd.f32 %v412, %v635
        %v665 = vadd.f32 %v413, %v637
        %v666 = vadd.f32 %v414, %v639
        %v667 = vadd.f32 %v415, %v641
        %v668 = vadd.f32 %v416, %v643
        %v669 = vadd.f32 %v417, %v645
        %670 = vrot.lane.b32.xlu0 %v406, 126
        %v671 = vpop.permute.xlu0 %670
        %672 = vrot.lane.b32.xlu0 %v407, 126
        %v673 = vpop.permute.xlu0 %672
        %674 = vrot.lane.b32.xlu0 %v408, 126
        %v675 = vpop.permute.xlu0 %674
        %676 = vrot.lane.b32.xlu0 %v409, 126
        %v677 = vpop.permute.xlu0 %676
        %678 = vrot.lane.b32.xlu0 %v410, 126
        %v679 = vpop.permute.xlu0 %678
        %680 = vrot.lane.b32.xlu0 %v411, 126
        %v681 = vpop.permute.xlu0 %680
        %682 = vrot.lane.b32.xlu0 %v412, 126
        %v683 = vpop.permute.xlu0 %682
        %684 = vrot.lane.b32.xlu0 %v413, 126
        %v685 = vpop.permute.xlu0 %684
        %686 = vrot.lane.b32.xlu0 %v414, 126
        %v687 = vpop.permute.xlu0 %686
        %688 = vrot.lane.b32.xlu0 %v415, 126
        %v689 = vpop.permute.xlu0 %688
        %690 = vrot.lane.b32.xlu0 %v416, 126
        %v691 = vpop.permute.xlu0 %690
        %692 = vrot.lane.b32.xlu0 %v417, 126
        %v693 = vpop.permute.xlu0 %692
        %v706 = vadd.f32 %v658, %v671
        %v707 = vadd.f32 %v659, %v673
        %v708 = vadd.f32 %v660, %v675
        %v709 = vadd.f32 %v661, %v677
        %v710 = vadd.f32 %v662, %v679
        %v711 = vadd.f32 %v663, %v681
        %v712 = vadd.f32 %v664, %v683
        %v713 = vadd.f32 %v665, %v685
        %v714 = vadd.f32 %v666, %v687
        %v715 = vadd.f32 %v667, %v689
        %v716 = vadd.f32 %v668, %v691
        %v717 = vadd.f32 %v669, %v693
        %730 = vrot.lane.b32.xlu0 %v598, 127
        %v731 = vpop.permute.xlu0 %730
        %732 = vrot.lane.b32.xlu0 %v599, 127
        %v733 = vpop.permute.xlu0 %732
        %734 = vrot.lane.b32.xlu0 %v600, 127
        %v735 = vpop.permute.xlu0 %734
        %736 = vrot.lane.b32.xlu0 %v601, 127
        %v737 = vpop.permute.xlu0 %736
        %738 = vrot.lane.b32.xlu0 %v602, 127
        %v739 = vpop.permute.xlu0 %738
        %740 = vrot.lane.b32.xlu0 %v603, 127
        %v741 = vpop.permute.xlu0 %740
        %742 = vrot.lane.b32.xlu0 %v604, 127
        %v743 = vpop.permute.xlu0 %742
        %744 = vrot.lane.b32.xlu0 %v605, 127
        %v745 = vpop.permute.xlu0 %744
        %746 = vrot.lane.b32.xlu0 %v606, 127
        %v747 = vpop.permute.xlu0 %746
        %748 = vrot.lane.b32.xlu0 %v607, 127
        %v749 = vpop.permute.xlu0 %748
        %750 = vrot.lane.b32.xlu0 %v608, 127
        %v751 = vpop.permute.xlu0 %750
        %752 = vrot.lane.b32.xlu0 %v609, 127
        %v753 = vpop.permute.xlu0 %752
        %v766 = vadd.f32 %v598, %v731
        %v767 = vadd.f32 %v599, %v733
        %v768 = vadd.f32 %v600, %v735
        %v769 = vadd.f32 %v601, %v737
        %v770 = vadd.f32 %v602, %v739
        %v771 = vadd.f32 %v603, %v741
        %v772 = vadd.f32 %v604, %v743
        %v773 = vadd.f32 %v605, %v745
        %v774 = vadd.f32 %v606, %v747
        %v775 = vadd.f32 %v607, %v749
        %v776 = vadd.f32 %v608, %v751
        %v777 = vadd.f32 %v609, %v753
        %778 = vrot.lane.b32.xlu0 %v598, 126
        %v779 = vpop.permute.xlu0 %778
        %780 = vrot.lane.b32.xlu0 %v599, 126
        %v781 = vpop.permute.xlu0 %780
        %782 = vrot.lane.b32.xlu0 %v600, 126
        %v783 = vpop.permute.xlu0 %782
        %784 = vrot.lane.b32.xlu0 %v601, 126
        %v785 = vpop.permute.xlu0 %784
        %786 = vrot.lane.b32.xlu0 %v602, 126
        %v787 = vpop.permute.xlu0 %786
        %788 = vrot.lane.b32.xlu0 %v603, 126
        %v789 = vpop.permute.xlu0 %788
        %790 = vrot.lane.b32.xlu0 %v604, 126
        %v791 = vpop.permute.xlu0 %790
        %792 = vrot.lane.b32.xlu0 %v605, 126
        %v793 = vpop.permute.xlu0 %792
        %794 = vrot.lane.b32.xlu0 %v606, 126
        %v795 = vpop.permute.xlu0 %794
        %796 = vrot.lane.b32.xlu0 %v607, 126
        %v797 = vpop.permute.xlu0 %796
        %798 = vrot.lane.b32.xlu0 %v608, 126
        %v799 = vpop.permute.xlu0 %798
        %800 = vrot.lane.b32.xlu0 %v609, 126
        %v801 = vpop.permute.xlu0 %800
        %v814 = vadd.f32 %v766, %v779
        %v815 = vadd.f32 %v767, %v781
        %v816 = vadd.f32 %v768, %v783
        %v817 = vadd.f32 %v769, %v785
        %v818 = vadd.f32 %v770, %v787
        %v819 = vadd.f32 %v771, %v789
        %v820 = vadd.f32 %v772, %v791
        %v821 = vadd.f32 %v773, %v793
        %v822 = vadd.f32 %v774, %v795
        %v823 = vadd.f32 %v775, %v797
        %v824 = vadd.f32 %v776, %v799
        %v825 = vadd.f32 %v777, %v801
        %v826 = vmul.f32 %v406, %v406
        %v827 = vmul.f32 %v407, %v407
        %v828 = vmul.f32 %v408, %v408
        %v829 = vmul.f32 %v409, %v409
        %v830 = vmul.f32 %v410, %v410
        %v831 = vmul.f32 %v411, %v411
        %v832 = vmul.f32 %v412, %v412
        %v833 = vmul.f32 %v413, %v413
        %v834 = vmul.f32 %v414, %v414
        %v835 = vmul.f32 %v415, %v415
        %v836 = vmul.f32 %v416, %v416
        %v837 = vmul.f32 %v417, %v417
        %850 = vrot.lane.b32.xlu0 %v826, 127
        %v851 = vpop.permute.xlu0 %850
        %852 = vrot.lane.b32.xlu0 %v827, 127
        %v853 = vpop.permute.xlu0 %852
        %854 = vrot.lane.b32.xlu0 %v828, 127
        %v855 = vpop.permute.xlu0 %854
        %856 = vrot.lane.b32.xlu0 %v829, 127
        %v857 = vpop.permute.xlu0 %856
        %858 = vrot.lane.b32.xlu0 %v830, 127
        %v859 = vpop.permute.xlu0 %858
        %860 = vrot.lane.b32.xlu0 %v831, 127
        %v861 = vpop.permute.xlu0 %860
        %862 = vrot.lane.b32.xlu0 %v832, 127
        %v863 = vpop.permute.xlu0 %862
        %864 = vrot.lane.b32.xlu0 %v833, 127
        %v865 = vpop.permute.xlu0 %864
        %866 = vrot.lane.b32.xlu0 %v834, 127
        %v867 = vpop.permute.xlu0 %866
        %868 = vrot.lane.b32.xlu0 %v835, 127
        %v869 = vpop.permute.xlu0 %868
        %870 = vrot.lane.b32.xlu0 %v836, 127
        %v871 = vpop.permute.xlu0 %870
        %872 = vrot.lane.b32.xlu0 %v837, 127
        %v873 = vpop.permute.xlu0 %872
        %v886 = vadd.f32 %v826, %v851
        %v887 = vadd.f32 %v827, %v853
        %v888 = vadd.f32 %v828, %v855
        %v889 = vadd.f32 %v829, %v857
        %v890 = vadd.f32 %v830, %v859
        %v891 = vadd.f32 %v831, %v861
        %v892 = vadd.f32 %v832, %v863
        %v893 = vadd.f32 %v833, %v865
        %v894 = vadd.f32 %v834, %v867
        %v895 = vadd.f32 %v835, %v869
        %v896 = vadd.f32 %v836, %v871
        %v897 = vadd.f32 %v837, %v873
        %898 = vrot.lane.b32.xlu0 %v826, 126
        %v899 = vpop.permute.xlu0 %898
        %900 = vrot.lane.b32.xlu0 %v827, 126
        %v901 = vpop.permute.xlu0 %900
        %902 = vrot.lane.b32.xlu0 %v828, 126
        %v903 = vpop.permute.xlu0 %902
        %904 = vrot.lane.b32.xlu0 %v829, 126
        %v905 = vpop.permute.xlu0 %904
        %906 = vrot.lane.b32.xlu0 %v830, 126
        %v907 = vpop.permute.xlu0 %906
        %908 = vrot.lane.b32.xlu0 %v831, 126
        %v909 = vpop.permute.xlu0 %908
        %910 = vrot.lane.b32.xlu0 %v832, 126
        %v911 = vpop.permute.xlu0 %910
        %912 = vrot.lane.b32.xlu0 %v833, 126
        %v913 = vpop.permute.xlu0 %912
        %914 = vrot.lane.b32.xlu0 %v834, 126
        %v915 = vpop.permute.xlu0 %914
        %916 = vrot.lane.b32.xlu0 %v835, 126
        %v917 = vpop.permute.xlu0 %916
        %918 = vrot.lane.b32.xlu0 %v836, 126
        %v919 = vpop.permute.xlu0 %918
        %920 = vrot.lane.b32.xlu0 %v837, 126
        %v921 = vpop.permute.xlu0 %920
        %v934 = vadd.f32 %v886, %v899
        %v935 = vadd.f32 %v887, %v901
        %v936 = vadd.f32 %v888, %v903
        %v937 = vadd.f32 %v889, %v905
        %v938 = vadd.f32 %v890, %v907
        %v939 = vadd.f32 %v891, %v909
        %v940 = vadd.f32 %v892, %v911
        %v941 = vadd.f32 %v893, %v913
        %v942 = vadd.f32 %v894, %v915
        %v943 = vadd.f32 %v895, %v917
        %v944 = vadd.f32 %v896, %v919
        %v945 = vadd.f32 %v897, %v921
        %v946 = vmul.f32 %v598, %v598
        %v947 = vmul.f32 %v599, %v599
        %v948 = vmul.f32 %v600, %v600
        %v949 = vmul.f32 %v601, %v601
        %v950 = vmul.f32 %v602, %v602
        %v951 = vmul.f32 %v603, %v603
        %v952 = vmul.f32 %v604, %v604
        %v953 = vmul.f32 %v605, %v605
        %v954 = vmul.f32 %v606, %v606
        %v955 = vmul.f32 %v607, %v607
        %v956 = vmul.f32 %v608, %v608
        %v957 = vmul.f32 %v609, %v609
        %970 = vrot.lane.b32.xlu0 %v946, 127
        %v971 = vpop.permute.xlu0 %970
        %972 = vrot.lane.b32.xlu0 %v947, 127
        %v973 = vpop.permute.xlu0 %972
        %974 = vrot.lane.b32.xlu0 %v948, 127
        %v975 = vpop.permute.xlu0 %974
        %976 = vrot.lane.b32.xlu0 %v949, 127
        %v977 = vpop.permute.xlu0 %976
        %978 = vrot.lane.b32.xlu0 %v950, 127
        %v979 = vpop.permute.xlu0 %978
        %980 = vrot.lane.b32.xlu0 %v951, 127
        %v981 = vpop.permute.xlu0 %980
        %982 = vrot.lane.b32.xlu0 %v952, 127
        %v983 = vpop.permute.xlu0 %982
        %984 = vrot.lane.b32.xlu0 %v953, 127
        %v985 = vpop.permute.xlu0 %984
        %986 = vrot.lane.b32.xlu0 %v954, 127
        %v987 = vpop.permute.xlu0 %986
        %988 = vrot.lane.b32.xlu0 %v955, 127
        %v989 = vpop.permute.xlu0 %988
        %990 = vrot.lane.b32.xlu0 %v956, 127
        %v991 = vpop.permute.xlu0 %990
        %992 = vrot.lane.b32.xlu0 %v957, 127
        %v993 = vpop.permute.xlu0 %992
        %v1006 = vadd.f32 %v946, %v971
        %v1007 = vadd.f32 %v947, %v973
        %v1008 = vadd.f32 %v948, %v975
        %v1009 = vadd.f32 %v949, %v977
        %v1010 = vadd.f32 %v950, %v979
        %v1011 = vadd.f32 %v951, %v981
        %v1012 = vadd.f32 %v952, %v983
        %v1013 = vadd.f32 %v953, %v985
        %v1014 = vadd.f32 %v954, %v987
        %v1015 = vadd.f32 %v955, %v989
        %v1016 = vadd.f32 %v956, %v991
        %v1017 = vadd.f32 %v957, %v993
        %1018 = vrot.lane.b32.xlu0 %v946, 126
        %v1019 = vpop.permute.xlu0 %1018
        %1020 = vrot.lane.b32.xlu0 %v947, 126
        %v1021 = vpop.permute.xlu0 %1020
        %1022 = vrot.lane.b32.xlu0 %v948, 126
        %v1023 = vpop.permute.xlu0 %1022
        %1024 = vrot.lane.b32.xlu0 %v949, 126
        %v1025 = vpop.permute.xlu0 %1024
        %1026 = vrot.lane.b32.xlu0 %v950, 126
        %v1027 = vpop.permute.xlu0 %1026
        %1028 = vrot.lane.b32.xlu0 %v951, 126
        %v1029 = vpop.permute.xlu0 %1028
        %1030 = vrot.lane.b32.xlu0 %v952, 126
        %v1031 = vpop.permute.xlu0 %1030
        %1032 = vrot.lane.b32.xlu0 %v953, 126
        %v1033 = vpop.permute.xlu0 %1032
        %1034 = vrot.lane.b32.xlu0 %v954, 126
        %v1035 = vpop.permute.xlu0 %1034
        %1036 = vrot.lane.b32.xlu0 %v955, 126
        %v1037 = vpop.permute.xlu0 %1036
        %1038 = vrot.lane.b32.xlu0 %v956, 126
        %v1039 = vpop.permute.xlu0 %1038
        %1040 = vrot.lane.b32.xlu0 %v957, 126
        %v1041 = vpop.permute.xlu0 %1040
        %v1054 = vadd.f32 %v1006, %v1019
        %v1055 = vadd.f32 %v1007, %v1021
        %v1056 = vadd.f32 %v1008, %v1023
        %v1057 = vadd.f32 %v1009, %v1025
        %v1058 = vadd.f32 %v1010, %v1027
        %v1059 = vadd.f32 %v1011, %v1029
        %v1060 = vadd.f32 %v1012, %v1031
        %v1061 = vadd.f32 %v1013, %v1033
        %v1062 = vadd.f32 %v1014, %v1035
        %v1063 = vadd.f32 %v1015, %v1037
        %v1064 = vadd.f32 %v1016, %v1039
        %v1065 = vadd.f32 %v1017, %v1041
        %v1066 = vmul.f32 %v406, %v598
        %v1067 = vmul.f32 %v407, %v599
        %v1068 = vmul.f32 %v408, %v600
        %v1069 = vmul.f32 %v409, %v601
        %v1070 = vmul.f32 %v410, %v602
        %v1071 = vmul.f32 %v411, %v603
        %v1072 = vmul.f32 %v412, %v604
        %v1073 = vmul.f32 %v413, %v605
        %v1074 = vmul.f32 %v414, %v606
        %v1075 = vmul.f32 %v415, %v607
        %v1076 = vmul.f32 %v416, %v608
        %v1077 = vmul.f32 %v417, %v609
        %1090 = vrot.lane.b32.xlu0 %v1066, 127
        %v1091 = vpop.permute.xlu0 %1090
        %1092 = vrot.lane.b32.xlu0 %v1067, 127
        %v1093 = vpop.permute.xlu0 %1092
        %1094 = vrot.lane.b32.xlu0 %v1068, 127
        %v1095 = vpop.permute.xlu0 %1094
        %1096 = vrot.lane.b32.xlu0 %v1069, 127
        %v1097 = vpop.permute.xlu0 %1096
        %1098 = vrot.lane.b32.xlu0 %v1070, 127
        %v1099 = vpop.permute.xlu0 %1098
        %1100 = vrot.lane.b32.xlu0 %v1071, 127
        %v1101 = vpop.permute.xlu0 %1100
        %1102 = vrot.lane.b32.xlu0 %v1072, 127
        %v1103 = vpop.permute.xlu0 %1102
        %1104 = vrot.lane.b32.xlu0 %v1073, 127
        %v1105 = vpop.permute.xlu0 %1104
        %1106 = vrot.lane.b32.xlu0 %v1074, 127
        %v1107 = vpop.permute.xlu0 %1106
        %1108 = vrot.lane.b32.xlu0 %v1075, 127
        %v1109 = vpop.permute.xlu0 %1108
        %1110 = vrot.lane.b32.xlu0 %v1076, 127
        %v1111 = vpop.permute.xlu0 %1110
        %1112 = vrot.lane.b32.xlu0 %v1077, 127
        %v1113 = vpop.permute.xlu0 %1112
        %v1126 = vadd.f32 %v1066, %v1091
        %v1127 = vadd.f32 %v1067, %v1093
        %v1128 = vadd.f32 %v1068, %v1095
        %v1129 = vadd.f32 %v1069, %v1097
        %v1130 = vadd.f32 %v1070, %v1099
        %v1131 = vadd.f32 %v1071, %v1101
        %v1132 = vadd.f32 %v1072, %v1103
        %v1133 = vadd.f32 %v1073, %v1105
        %v1134 = vadd.f32 %v1074, %v1107
        %v1135 = vadd.f32 %v1075, %v1109
        %v1136 = vadd.f32 %v1076, %v1111
        %v1137 = vadd.f32 %v1077, %v1113
        %1138 = vrot.lane.b32.xlu0 %v1066, 126
        %v1139 = vpop.permute.xlu0 %1138
        %1140 = vrot.lane.b32.xlu0 %v1067, 126
        %v1141 = vpop.permute.xlu0 %1140
        %1142 = vrot.lane.b32.xlu0 %v1068, 126
        %v1143 = vpop.permute.xlu0 %1142
        %1144 = vrot.lane.b32.xlu0 %v1069, 126
        %v1145 = vpop.permute.xlu0 %1144
        %1146 = vrot.lane.b32.xlu0 %v1070, 126
        %v1147 = vpop.permute.xlu0 %1146
        %1148 = vrot.lane.b32.xlu0 %v1071, 126
        %v1149 = vpop.permute.xlu0 %1148
        %1150 = vrot.lane.b32.xlu0 %v1072, 126
        %v1151 = vpop.permute.xlu0 %1150
        %1152 = vrot.lane.b32.xlu0 %v1073, 126
        %v1153 = vpop.permute.xlu0 %1152
        %1154 = vrot.lane.b32.xlu0 %v1074, 126
        %v1155 = vpop.permute.xlu0 %1154
        %1156 = vrot.lane.b32.xlu0 %v1075, 126
        %v1157 = vpop.permute.xlu0 %1156
        %1158 = vrot.lane.b32.xlu0 %v1076, 126
        %v1159 = vpop.permute.xlu0 %1158
        %1160 = vrot.lane.b32.xlu0 %v1077, 126
        %v1161 = vpop.permute.xlu0 %1160
        %v1174 = vadd.f32 %v1126, %v1139
        %v1175 = vadd.f32 %v1127, %v1141
        %v1176 = vadd.f32 %v1128, %v1143
        %v1177 = vadd.f32 %v1129, %v1145
        %v1178 = vadd.f32 %v1130, %v1147
        %v1179 = vadd.f32 %v1131, %v1149
        %v1180 = vadd.f32 %v1132, %v1151
        %v1181 = vadd.f32 %v1133, %v1153
        %v1182 = vadd.f32 %v1134, %v1155
        %v1183 = vadd.f32 %v1135, %v1157
        %v1184 = vadd.f32 %v1136, %v1159
        %v1185 = vadd.f32 %v1137, %v1161
        %vm1198 = vcmask 1046528
        %v1199 = vrot.slane %v706, 1
        %v1200 = vrot.slane %v707, 1
        %v1201 = vsel %vm1198, %v1199, %v1200
        %v1202 = vrot.slane %v708, 1
        %v1203 = vsel %vm1198, %v1200, %v1202
        %v1204 = vrot.slane %v709, 1
        %v1205 = vrot.slane %v710, 1
        %v1206 = vsel %vm1198, %v1204, %v1205
        %v1207 = vrot.slane %v711, 1
        %v1208 = vsel %vm1198, %v1205, %v1207
        %v1209 = vrot.slane %v712, 1
        %v1210 = vrot.slane %v713, 1
        %v1211 = vsel %vm1198, %v1209, %v1210
        %v1212 = vrot.slane %v714, 1
        %v1213 = vsel %vm1198, %v1210, %v1212
        %v1214 = vrot.slane %v715, 1
        %v1215 = vrot.slane %v716, 1
        %v1216 = vsel %vm1198, %v1214, %v1215
        %v1217 = vrot.slane %v717, 1
        %v1218 = vsel %vm1198, %v1215, %v1217
        %v1227 = vadd.f32 %v706, %v1201
        %v1228 = vadd.f32 %v707, %v1203
        %v1229 = vadd.f32 %v709, %v1206
        %v1230 = vadd.f32 %v710, %v1208
        %v1231 = vadd.f32 %v712, %v1211
        %v1232 = vadd.f32 %v713, %v1213
        %v1233 = vadd.f32 %v715, %v1216
        %v1234 = vadd.f32 %v716, %v1218
        %vm1235 = vcmask 1045504
        %v1236 = vrot.slane %v706, 2
        %v1237 = vrot.slane %v707, 2
        %v1238 = vsel %vm1235, %v1236, %v1237
        %v1239 = vrot.slane %v708, 2
        %v1240 = vsel %vm1235, %v1237, %v1239
        %v1241 = vrot.slane %v709, 2
        %v1242 = vrot.slane %v710, 2
        %v1243 = vsel %vm1235, %v1241, %v1242
        %v1244 = vrot.slane %v711, 2
        %v1245 = vsel %vm1235, %v1242, %v1244
        %v1246 = vrot.slane %v712, 2
        %v1247 = vrot.slane %v713, 2
        %v1248 = vsel %vm1235, %v1246, %v1247
        %v1249 = vrot.slane %v714, 2
        %v1250 = vsel %vm1235, %v1247, %v1249
        %v1251 = vrot.slane %v715, 2
        %v1252 = vrot.slane %v716, 2
        %v1253 = vsel %vm1235, %v1251, %v1252
        %v1254 = vrot.slane %v717, 2
        %v1255 = vsel %vm1235, %v1252, %v1254
        %v1264 = vadd.f32 %v1227, %v1238
        %v1265 = vadd.f32 %v1228, %v1240
        %v1266 = vadd.f32 %v1229, %v1243
        %v1267 = vadd.f32 %v1230, %v1245
        %v1268 = vadd.f32 %v1231, %v1248
        %v1269 = vadd.f32 %v1232, %v1250
        %v1270 = vadd.f32 %v1233, %v1253
        %v1271 = vadd.f32 %v1234, %v1255
        %v1272 = vmul.f32 %v1264, 0.11111111
        %v1273 = vmul.f32 %v1265, 0.11111111
        %v1274 = vmul.f32 %v1266, 0.11111111
        %v1275 = vmul.f32 %v1267, 0.11111111
        %v1276 = vmul.f32 %v1268, 0.11111111
        %v1277 = vmul.f32 %v1269, 0.11111111
        %v1278 = vmul.f32 %v1270, 0.11111111
        %v1279 = vmul.f32 %v1271, 0.11111111
        %v1292 = vrot.slane %v814, 1
        %v1293 = vrot.slane %v815, 1
        %v1294 = vsel %vm1198, %v1292, %v1293
        %v1295 = vrot.slane %v816, 1
        %v1296 = vsel %vm1198, %v1293, %v1295
        %v1297 = vrot.slane %v817, 1
        %v1298 = vrot.slane %v818, 1
        %v1299 = vsel %vm1198, %v1297, %v1298
        %v1300 = vrot.slane %v819, 1
        %v1301 = vsel %vm1198, %v1298, %v1300
        %v1302 = vrot.slane %v820, 1
        %v1303 = vrot.slane %v821, 1
        %v1304 = vsel %vm1198, %v1302, %v1303
        %v1305 = vrot.slane %v822, 1
        %v1306 = vsel %vm1198, %v1303, %v1305
        %v1307 = vrot.slane %v823, 1
        %v1308 = vrot.slane %v824, 1
        %v1309 = vsel %vm1198, %v1307, %v1308
        %v1310 = vrot.slane %v825, 1
        %v1311 = vsel %vm1198, %v1308, %v1310
        %v1320 = vadd.f32 %v814, %v1294
        %v1321 = vadd.f32 %v815, %v1296
        %v1322 = vadd.f32 %v817, %v1299
        %v1323 = vadd.f32 %v818, %v1301
        %v1324 = vadd.f32 %v820, %v1304
        %v1325 = vadd.f32 %v821, %v1306
        %v1326 = vadd.f32 %v823, %v1309
        %v1327 = vadd.f32 %v824, %v1311
        %v1328 = vrot.slane %v814, 2
        %v1329 = vrot.slane %v815, 2
        %v1330 = vsel %vm1235, %v1328, %v1329
        %v1331 = vrot.slane %v816, 2
        %v1332 = vsel %vm1235, %v1329, %v1331
        %v1333 = vrot.slane %v817, 2
        %v1334 = vrot.slane %v818, 2
        %v1335 = vsel %vm1235, %v1333, %v1334
        %v1336 = vrot.slane %v819, 2
        %v1337 = vsel %vm1235, %v1334, %v1336
        %v1338 = vrot.slane %v820, 2
        %v1339 = vrot.slane %v821, 2
        %v1340 = vsel %vm1235, %v1338, %v1339
        %v1341 = vrot.slane %v822, 2
        %v1342 = vsel %vm1235, %v1339, %v1341
        %v1343 = vrot.slane %v823, 2
        %v1344 = vrot.slane %v824, 2
        %v1345 = vsel %vm1235, %v1343, %v1344
        %v1346 = vrot.slane %v825, 2
        %v1347 = vsel %vm1235, %v1344, %v1346
        %v1356 = vadd.f32 %v1320, %v1330
        %v1357 = vadd.f32 %v1321, %v1332
        %v1358 = vadd.f32 %v1322, %v1335
        %v1359 = vadd.f32 %v1323, %v1337
        %v1360 = vadd.f32 %v1324, %v1340
        %v1361 = vadd.f32 %v1325, %v1342
        %v1362 = vadd.f32 %v1326, %v1345
        %v1363 = vadd.f32 %v1327, %v1347
        %v1364 = vmul.f32 %v1356, 0.11111111
        %v1365 = vmul.f32 %v1357, 0.11111111
        %v1366 = vmul.f32 %v1358, 0.11111111
        %v1367 = vmul.f32 %v1359, 0.11111111
        %v1368 = vmul.f32 %v1360, 0.11111111
        %v1369 = vmul.f32 %v1361, 0.11111111
        %v1370 = vmul.f32 %v1362, 0.11111111
        %v1371 = vmul.f32 %v1363, 0.11111111
        %v1384 = vrot.slane %v934, 1
        %v1385 = vrot.slane %v935, 1
        %v1386 = vsel %vm1198, %v1384, %v1385
        %v1387 = vrot.slane %v936, 1
        %v1388 = vsel %vm1198, %v1385, %v1387
        %v1389 = vrot.slane %v937, 1
        %v1390 = vrot.slane %v938, 1
        %v1391 = vsel %vm1198, %v1389, %v1390
        %v1392 = vrot.slane %v939, 1
        %v1393 = vsel %vm1198, %v1390, %v1392
        %v1394 = vrot.slane %v940, 1
        %v1395 = vrot.slane %v941, 1
        %v1396 = vsel %vm1198, %v1394, %v1395
        %v1397 = vrot.slane %v942, 1
        %v1398 = vsel %vm1198, %v1395, %v1397
        %v1399 = vrot.slane %v943, 1
        %v1400 = vrot.slane %v944, 1
        %v1401 = vsel %vm1198, %v1399, %v1400
        %v1402 = vrot.slane %v945, 1
        %v1403 = vsel %vm1198, %v1400, %v1402
        %v1412 = vadd.f32 %v934, %v1386
        %v1413 = vadd.f32 %v935, %v1388
        %v1414 = vadd.f32 %v937, %v1391
        %v1415 = vadd.f32 %v938, %v1393
        %v1416 = vadd.f32 %v940, %v1396
        %v1417 = vadd.f32 %v941, %v1398
        %v1418 = vadd.f32 %v943, %v1401
        %v1419 = vadd.f32 %v944, %v1403
        %v1420 = vrot.slane %v934, 2
        %v1421 = vrot.slane %v935, 2
        %v1422 = vsel %vm1235, %v1420, %v1421
        %v1423 = vrot.slane %v936, 2
        %v1424 = vsel %vm1235, %v1421, %v1423
        %v1425 = vrot.slane %v937, 2
        %v1426 = vrot.slane %v938, 2
        %v1427 = vsel %vm1235, %v1425, %v1426
        %v1428 = vrot.slane %v939, 2
        %v1429 = vsel %vm1235, %v1426, %v1428
        %v1430 = vrot.slane %v940, 2
        %v1431 = vrot.slane %v941, 2
        %v1432 = vsel %vm1235, %v1430, %v1431
        %v1433 = vrot.slane %v942, 2
        %v1434 = vsel %vm1235, %v1431, %v1433
        %v1435 = vrot.slane %v943, 2
        %v1436 = vrot.slane %v944, 2
        %v1437 = vsel %vm1235, %v1435, %v1436
        %v1438 = vrot.slane %v945, 2
        %v1439 = vsel %vm1235, %v1436, %v1438
        %v1448 = vadd.f32 %v1412, %v1422
        %v1449 = vadd.f32 %v1413, %v1424
        %v1450 = vadd.f32 %v1414, %v1427
        %v1451 = vadd.f32 %v1415, %v1429
        %v1452 = vadd.f32 %v1416, %v1432
        %v1453 = vadd.f32 %v1417, %v1434
        %v1454 = vadd.f32 %v1418, %v1437
        %v1455 = vadd.f32 %v1419, %v1439
        %v1456 = vmul.f32 %v1448, 0.11111111
        %v1457 = vmul.f32 %v1449, 0.11111111
        %v1458 = vmul.f32 %v1450, 0.11111111
        %v1459 = vmul.f32 %v1451, 0.11111111
        %v1460 = vmul.f32 %v1452, 0.11111111
        %v1461 = vmul.f32 %v1453, 0.11111111
        %v1462 = vmul.f32 %v1454, 0.11111111
        %v1463 = vmul.f32 %v1455, 0.11111111
        %v1476 = vrot.slane %v1054, 1
        %v1477 = vrot.slane %v1055, 1
        %v1478 = vsel %vm1198, %v1476, %v1477
        %v1479 = vrot.slane %v1056, 1
        %v1480 = vsel %vm1198, %v1477, %v1479
        %v1481 = vrot.slane %v1057, 1
        %v1482 = vrot.slane %v1058, 1
        %v1483 = vsel %vm1198, %v1481, %v1482
        %v1484 = vrot.slane %v1059, 1
        %v1485 = vsel %vm1198, %v1482, %v1484
        %v1486 = vrot.slane %v1060, 1
        %v1487 = vrot.slane %v1061, 1
        %v1488 = vsel %vm1198, %v1486, %v1487
        %v1489 = vrot.slane %v1062, 1
        %v1490 = vsel %vm1198, %v1487, %v1489
        %v1491 = vrot.slane %v1063, 1
        %v1492 = vrot.slane %v1064, 1
        %v1493 = vsel %vm1198, %v1491, %v1492
        %v1494 = vrot.slane %v1065, 1
        %v1495 = vsel %vm1198, %v1492, %v1494
        %v1504 = vadd.f32 %v1054, %v1478
        %v1505 = vadd.f32 %v1055, %v1480
        %v1506 = vadd.f32 %v1057, %v1483
        %v1507 = vadd.f32 %v1058, %v1485
        %v1508 = vadd.f32 %v1060, %v1488
        %v1509 = vadd.f32 %v1061, %v1490
        %v1510 = vadd.f32 %v1063, %v1493
        %v1511 = vadd.f32 %v1064, %v1495
        %v1512 = vrot.slane %v1054, 2
        %v1513 = vrot.slane %v1055, 2
        %v1514 = vsel %vm1235, %v1512, %v1513
        %v1515 = vrot.slane %v1056, 2
        %v1516 = vsel %vm1235, %v1513, %v1515
        %v1517 = vrot.slane %v1057, 2
        %v1518 = vrot.slane %v1058, 2
        %v1519 = vsel %vm1235, %v1517, %v1518
        %v1520 = vrot.slane %v1059, 2
        %v1521 = vsel %vm1235, %v1518, %v1520
        %v1522 = vrot.slane %v1060, 2
        %v1523 = vrot.slane %v1061, 2
        %v1524 = vsel %vm1235, %v1522, %v1523
        %v1525 = vrot.slane %v1062, 2
        %v1526 = vsel %vm1235, %v1523, %v1525
        %v1527 = vrot.slane %v1063, 2
        %v1528 = vrot.slane %v1064, 2
        %v1529 = vsel %vm1235, %v1527, %v1528
        %v1530 = vrot.slane %v1065, 2
        %v1531 = vsel %vm1235, %v1528, %v1530
        %v1540 = vadd.f32 %v1504, %v1514
        %v1541 = vadd.f32 %v1505, %v1516
        %v1542 = vadd.f32 %v1506, %v1519
        %v1543 = vadd.f32 %v1507, %v1521
        %v1544 = vadd.f32 %v1508, %v1524
        %v1545 = vadd.f32 %v1509, %v1526
        %v1546 = vadd.f32 %v1510, %v1529
        %v1547 = vadd.f32 %v1511, %v1531
        %v1548 = vmul.f32 %v1540, 0.11111111
        %v1549 = vmul.f32 %v1541, 0.11111111
        %v1550 = vmul.f32 %v1542, 0.11111111
        %v1551 = vmul.f32 %v1543, 0.11111111
        %v1552 = vmul.f32 %v1544, 0.11111111
        %v1553 = vmul.f32 %v1545, 0.11111111
        %v1554 = vmul.f32 %v1546, 0.11111111
        %v1555 = vmul.f32 %v1547, 0.11111111
        %v1568 = vrot.slane %v1174, 1
        %v1569 = vrot.slane %v1175, 1
        %v1570 = vsel %vm1198, %v1568, %v1569
        %v1571 = vrot.slane %v1176, 1
        %v1572 = vsel %vm1198, %v1569, %v1571
        %v1573 = vrot.slane %v1177, 1
        %v1574 = vrot.slane %v1178, 1
        %v1575 = vsel %vm1198, %v1573, %v1574
        %v1576 = vrot.slane %v1179, 1
        %v1577 = vsel %vm1198, %v1574, %v1576
        %v1578 = vrot.slane %v1180, 1
        %v1579 = vrot.slane %v1181, 1
        %v1580 = vsel %vm1198, %v1578, %v1579
        %v1581 = vrot.slane %v1182, 1
        %v1582 = vsel %vm1198, %v1579, %v1581
        %v1583 = vrot.slane %v1183, 1
        %v1584 = vrot.slane %v1184, 1
        %v1585 = vsel %vm1198, %v1583, %v1584
        %v1586 = vrot.slane %v1185, 1
        %v1587 = vsel %vm1198, %v1584, %v1586
        %v1596 = vadd.f32 %v1174, %v1570
        %v1597 = vadd.f32 %v1175, %v1572
        %v1598 = vadd.f32 %v1177, %v1575
        %v1599 = vadd.f32 %v1178, %v1577
        %v1600 = vadd.f32 %v1180, %v1580
        %v1601 = vadd.f32 %v1181, %v1582
        %v1602 = vadd.f32 %v1183, %v1585
        %v1603 = vadd.f32 %v1184, %v1587
        %v1604 = vrot.slane %v1174, 2
        %v1605 = vrot.slane %v1175, 2
        %v1606 = vsel %vm1235, %v1604, %v1605
        %v1607 = vrot.slane %v1176, 2
        %v1608 = vsel %vm1235, %v1605, %v1607
        %v1609 = vrot.slane %v1177, 2
        %v1610 = vrot.slane %v1178, 2
        %v1611 = vsel %vm1235, %v1609, %v1610
        %v1612 = vrot.slane %v1179, 2
        %v1613 = vsel %vm1235, %v1610, %v1612
        %v1614 = vrot.slane %v1180, 2
        %v1615 = vrot.slane %v1181, 2
        %v1616 = vsel %vm1235, %v1614, %v1615
        %v1617 = vrot.slane %v1182, 2
        %v1618 = vsel %vm1235, %v1615, %v1617
        %v1619 = vrot.slane %v1183, 2
        %v1620 = vrot.slane %v1184, 2
        %v1621 = vsel %vm1235, %v1619, %v1620
        %v1622 = vrot.slane %v1185, 2
        %v1623 = vsel %vm1235, %v1620, %v1622
        %v1632 = vadd.f32 %v1596, %v1606
        %v1633 = vadd.f32 %v1597, %v1608
        %v1634 = vadd.f32 %v1598, %v1611
        %v1635 = vadd.f32 %v1599, %v1613
        %v1636 = vadd.f32 %v1600, %v1616
        %v1637 = vadd.f32 %v1601, %v1618
        %v1638 = vadd.f32 %v1602, %v1621
        %v1639 = vadd.f32 %v1603, %v1623
        %v1640 = vmul.f32 %v1632, 0.11111111
        %v1641 = vmul.f32 %v1633, 0.11111111
        %v1642 = vmul.f32 %v1634, 0.11111111
        %v1643 = vmul.f32 %v1635, 0.11111111
        %v1644 = vmul.f32 %v1636, 0.11111111
        %v1645 = vmul.f32 %v1637, 0.11111111
        %v1646 = vmul.f32 %v1638, 0.11111111
        %v1647 = vmul.f32 %v1639, 0.11111111
        %v1648 = vmul.f32 %v1272, %v1272
        %v1649 = vmul.f32 %v1273, %v1273
        %v1650 = vmul.f32 %v1274, %v1274
        %v1651 = vmul.f32 %v1275, %v1275
        %v1652 = vmul.f32 %v1276, %v1276
        %v1653 = vmul.f32 %v1277, %v1277
        %v1654 = vmul.f32 %v1278, %v1278
        %v1655 = vmul.f32 %v1279, %v1279
        %v1656 = vsub.f32 %v1456, %v1648
        %v1657 = vsub.f32 %v1457, %v1649
        %v1658 = vsub.f32 %v1458, %v1650
        %v1659 = vsub.f32 %v1459, %v1651
        %v1660 = vsub.f32 %v1460, %v1652
        %v1661 = vsub.f32 %v1461, %v1653
        %v1662 = vsub.f32 %v1462, %v1654
        %v1663 = vsub.f32 %v1463, %v1655
        %v1664 = vmul.f32 %v1364, %v1364
        %v1665 = vmul.f32 %v1365, %v1365
        %v1666 = vmul.f32 %v1366, %v1366
        %v1667 = vmul.f32 %v1367, %v1367
        %v1668 = vmul.f32 %v1368, %v1368
        %v1669 = vmul.f32 %v1369, %v1369
        %v1670 = vmul.f32 %v1370, %v1370
        %v1671 = vmul.f32 %v1371, %v1371
        %v1672 = vsub.f32 %v1548, %v1664
        %v1673 = vsub.f32 %v1549, %v1665
        %v1674 = vsub.f32 %v1550, %v1666
        %v1675 = vsub.f32 %v1551, %v1667
        %v1676 = vsub.f32 %v1552, %v1668
        %v1677 = vsub.f32 %v1553, %v1669
        %v1678 = vsub.f32 %v1554, %v1670
        %v1679 = vsub.f32 %v1555, %v1671
        %v1680 = vmul.f32 %v1272, %v1364
        %v1681 = vmul.f32 %v1273, %v1365
        %v1682 = vmul.f32 %v1274, %v1366
        %v1683 = vmul.f32 %v1275, %v1367
        %v1684 = vmul.f32 %v1276, %v1368
        %v1685 = vmul.f32 %v1277, %v1369
        %v1686 = vmul.f32 %v1278, %v1370
        %v1687 = vmul.f32 %v1279, %v1371
        %v1688 = vsub.f32 %v1640, %v1680
        %v1689 = vsub.f32 %v1641, %v1681
        %v1690 = vsub.f32 %v1642, %v1682
        %v1691 = vsub.f32 %v1643, %v1683
        %v1692 = vsub.f32 %v1644, %v1684
        %v1693 = vsub.f32 %v1645, %v1685
        %v1694 = vsub.f32 %v1646, %v1686
        %v1695 = vsub.f32 %v1647, %v1687
        %v1696 = vmul.f32 %v1272, 2.0
        %v1697 = vmul.f32 %v1273, 2.0
        %v1698 = vmul.f32 %v1274, 2.0
        %v1699 = vmul.f32 %v1275, 2.0
        %v1700 = vmul.f32 %v1276, 2.0
        %v1701 = vmul.f32 %v1277, 2.0
        %v1702 = vmul.f32 %v1278, 2.0
        %v1703 = vmul.f32 %v1279, 2.0
        %v1704 = vmul.f32 %v1696, %v1364
        %v1705 = vmul.f32 %v1697, %v1365
        %v1706 = vmul.f32 %v1698, %v1366
        %v1707 = vmul.f32 %v1699, %v1367
        %v1708 = vmul.f32 %v1700, %v1368
        %v1709 = vmul.f32 %v1701, %v1369
        %v1710 = vmul.f32 %v1702, %v1370
        %v1711 = vmul.f32 %v1703, %v1371
        %v1712 = vadd.f32 %v1704, 0.0001
        %v1713 = vadd.f32 %v1705, 0.0001
        %v1714 = vadd.f32 %v1706, 0.0001
        %v1715 = vadd.f32 %v1707, 0.0001
        %v1716 = vadd.f32 %v1708, 0.0001
        %v1717 = vadd.f32 %v1709, 0.0001
        %v1718 = vadd.f32 %v1710, 0.0001
        %v1719 = vadd.f32 %v1711, 0.0001
        %v1720 = vmul.f32 %v1688, 2.0
        %v1721 = vmul.f32 %v1689, 2.0
        %v1722 = vmul.f32 %v1690, 2.0
        %v1723 = vmul.f32 %v1691, 2.0
        %v1724 = vmul.f32 %v1692, 2.0
        %v1725 = vmul.f32 %v1693, 2.0
        %v1726 = vmul.f32 %v1694, 2.0
        %v1727 = vmul.f32 %v1695, 2.0
        %v1728 = vadd.f32 %v1720, 0.0009
        %v1729 = vadd.f32 %v1721, 0.0009
        %v1730 = vadd.f32 %v1722, 0.0009
        %v1731 = vadd.f32 %v1723, 0.0009
        %v1732 = vadd.f32 %v1724, 0.0009
        %v1733 = vadd.f32 %v1725, 0.0009
        %v1734 = vadd.f32 %v1726, 0.0009
        %v1735 = vadd.f32 %v1727, 0.0009
        %v1736 = vmul.f32 %v1712, %v1728
        %v1737 = vmul.f32 %v1713, %v1729
        %v1738 = vmul.f32 %v1714, %v1730
        %v1739 = vmul.f32 %v1715, %v1731
        %v1740 = vmul.f32 %v1716, %v1732
        %v1741 = vmul.f32 %v1717, %v1733
        %v1742 = vmul.f32 %v1718, %v1734
        %v1743 = vmul.f32 %v1719, %v1735
        %v1744 = vadd.f32 %v1648, %v1664
        %v1745 = vadd.f32 %v1649, %v1665
        %v1746 = vadd.f32 %v1650, %v1666
        %v1747 = vadd.f32 %v1651, %v1667
        %v1748 = vadd.f32 %v1652, %v1668
        %v1749 = vadd.f32 %v1653, %v1669
        %v1750 = vadd.f32 %v1654, %v1670
        %v1751 = vadd.f32 %v1655, %v1671
        %v1752 = vadd.f32 %v1744, 0.0001
        %v1753 = vadd.f32 %v1745, 0.0001
        %v1754 = vadd.f32 %v1746, 0.0001
        %v1755 = vadd.f32 %v1747, 0.0001
        %v1756 = vadd.f32 %v1748, 0.0001
        %v1757 = vadd.f32 %v1749, 0.0001
        %v1758 = vadd.f32 %v1750, 0.0001
        %v1759 = vadd.f32 %v1751, 0.0001
        %v1760 = vadd.f32 %v1656, %v1672
        %v1761 = vadd.f32 %v1657, %v1673
        %v1762 = vadd.f32 %v1658, %v1674
        %v1763 = vadd.f32 %v1659, %v1675
        %v1764 = vadd.f32 %v1660, %v1676
        %v1765 = vadd.f32 %v1661, %v1677
        %v1766 = vadd.f32 %v1662, %v1678
        %v1767 = vadd.f32 %v1663, %v1679
        %v1768 = vadd.f32 %v1760, 0.0009
        %v1769 = vadd.f32 %v1761, 0.0009
        %v1770 = vadd.f32 %v1762, 0.0009
        %v1771 = vadd.f32 %v1763, 0.0009
        %v1772 = vadd.f32 %v1764, 0.0009
        %v1773 = vadd.f32 %v1765, 0.0009
        %v1774 = vadd.f32 %v1766, 0.0009
        %v1775 = vadd.f32 %v1767, 0.0009
        %v1776 = vmul.f32 %v1752, %v1768
        %v1777 = vmul.f32 %v1753, %v1769
        %v1778 = vmul.f32 %v1754, %v1770
        %v1779 = vmul.f32 %v1755, %v1771
        %v1780 = vmul.f32 %v1756, %v1772
        %v1781 = vmul.f32 %v1757, %v1773
        %v1782 = vmul.f32 %v1758, %v1774
        %v1783 = vmul.f32 %v1759, %v1775
        %v1784 = vrcp.pop %v1776
        %v1785 = vrcp.pop %v1777
        %v1786 = vrcp.pop %v1778
        %v1787 = vrcp.pop %v1779
        %v1788 = vrcp.pop %v1780
        %v1789 = vrcp.pop %v1781
        %v1790 = vrcp.pop %v1782
        %v1791 = vrcp.pop %v1783
        %v1792 = vmul.f32 %v1776, %v1784
        %v1793 = vmul.f32 %v1777, %v1785
        %v1794 = vmul.f32 %v1778, %v1786
        %v1795 = vmul.f32 %v1779, %v1787
        %v1796 = vmul.f32 %v1780, %v1788
        %v1797 = vmul.f32 %v1781, %v1789
        %v1798 = vmul.f32 %v1782, %v1790
        %v1799 = vmul.f32 %v1783, %v1791
        %v1800 = vsub.f32 2.0, %v1792
        %v1801 = vsub.f32 2.0, %v1793
        %v1802 = vsub.f32 2.0, %v1794
        %v1803 = vsub.f32 2.0, %v1795
        %v1804 = vsub.f32 2.0, %v1796
        %v1805 = vsub.f32 2.0, %v1797
        %v1806 = vsub.f32 2.0, %v1798
        %v1807 = vsub.f32 2.0, %v1799
        %v1808 = vmul.f32 %v1784, %v1800
        %v1809 = vmul.f32 %v1785, %v1801
        %v1810 = vmul.f32 %v1786, %v1802
        %v1811 = vmul.f32 %v1787, %v1803
        %v1812 = vmul.f32 %v1788, %v1804
        %v1813 = vmul.f32 %v1789, %v1805
        %v1814 = vmul.f32 %v1790, %v1806
        %v1815 = vmul.f32 %v1791, %v1807
        %v1816 = vmul.f32 %v1736, %v1808
        %v1817 = vmul.f32 %v1737, %v1809
        %v1818 = vmul.f32 %v1738, %v1810
        %v1819 = vmul.f32 %v1739, %v1811
        %v1820 = vmul.f32 %v1740, %v1812
        %v1821 = vmul.f32 %v1741, %v1813
        %v1822 = vmul.f32 %v1742, %v1814
        %v1823 = vmul.f32 %v1743, %v1815
        %vm1824 = vcmask 130048
        %1825 = vst.msk [vmem:[%s203] sm:$0xff] %vm1824, %v1816
        %1826 = vst.msk [vmem:[%s203 + $0x8] sm:$0xff] %vm1824, %v1817
        %1827 = vst.msk [vmem:[%s203 + $0x10] sm:$0xff] %vm1824, %v1818
        %1828 = vst.msk [vmem:[%s203 + $0x18] sm:$0xff] %vm1824, %v1819
        %1829 = vst.msk [vmem:[%s203 + $0x20] sm:$0xff] %vm1824, %v1820
        %1830 = vst.msk [vmem:[%s203 + $0x28] sm:$0xff] %vm1824, %v1821
        %1831 = vst.msk [vmem:[%s203 + $0x30] sm:$0xff] %vm1824, %v1822
        %1832 = vst.msk [vmem:[%s203 + $0x38] sm:$0xff] %vm1824, %v1823
        %s1833 = sand.u32 %s82, 1
        %s1834 = scalar_lea.sflag [#allocation4], %s1833
        %s1835 = sand.u32 %s82, 1
        %s1836 = smul.addr %s1835, 64
        %s1837 = scalar_lea.vmem [#allocation7], %s1836
        // Predicated region
        $region37: #{tpu_custom_call.1} parent=27 // pred_check
          %p1838 = pneg %p92
        $region38: #{tpu_custom_call.1} parent=27 // pred_check_branch
          %1840 = sbr.rel (%p1838) target = $region40
        $region39: #{tpu_custom_call.1} parent=27 // pred_region
          %s1841 = smul.u32 4, %s22
          %s1843 = ssub.s32 1024, 1024
          %1844 = vsyncadd %s1834, %s1843
          %s1845 = smul.addr %s1841, 2
          %s1846 = smul.addr %s1845, 128
          %s1847 = scalar_lea.hbm %s2, %s1846
          %s1848 = sshll.u32 %s1837, 4
          %s1849 = int_to_ptr.vmem [resolvable:$true] %s1848
          %1854 = dma.vmem_to_hbm [thread:$0]  %s1849, 1024, %s1847, %s1834, 128, 128, 8
        $region40: #{tpu_custom_call.1} parent=27 // pred_fallthru
          _
      $region28: #{tpu_custom_call.1} parent=5 // pred_fallthru
        _
      %p1855 = scmp.le.s32.totalorder 2, %s17
      // Predicated region
      $region41: #{tpu_custom_call.1} parent=5 // pred_check
        %p1856 = pneg %p1855
      $region42: #{tpu_custom_call.1} parent=5 // pred_check_branch
        %1858 = sbr.rel (%p1856) target = $region44
      $region43: #{tpu_custom_call.1} parent=5 // pred_region
        %s1859 = ssub.s32 %s17, 2
        // Predicated region
        $region45: #{tpu_custom_call.1} parent=43 // pred_check
          %p1860 = pneg %p98
        $region46: #{tpu_custom_call.1} parent=43 // pred_check_branch
          %1862 = sbr.rel (%p1860) target = $region48
        $region47: #{tpu_custom_call.1} parent=43 // pred_region
          %s1863 = sand.u32 %s83, 1
          %s1864 = scalar_lea.sflag [#allocation4], %s1863
          %s1865 = sand.u32 %s83, 1
          %s1866 = smul.addr %s1865, 64
          %s1867 = scalar_lea.vmem [#allocation7], %s1866
          %1868 = dma.done %s1864, 1024
        $region48: #{tpu_custom_call.1} parent=43 // pred_fallthru
          _
      $region44: #{tpu_custom_call.1} parent=5 // pred_fallthru
        _
    $region6: #{tpu_custom_call.1} parent=1 // loop_footer
      %s21 = sadd.s32 1, %s17
    $region7: #{tpu_custom_call.1} parent=1 // loop_footer_branch
      %16 = sbr.rel target = $region3
    $region8: #{tpu_custom_call.1} parent=1 // loop_exit
      _
    %1869 = vsyncpa [#allocation3], 1
    %s1870 = scalar_lea.sflag [#allocation3], 1
    %1871 = vsyncpa %s1870, 1
    %1872 = vsyncpa [#allocation6], 1
    %s1873 = scalar_lea.sflag [#allocation6], 1
    %1874 = vsyncpa %s1873, 1
    %1875 = vsyncpa [#allocation4], 1
    %s1876 = scalar_lea.sflag [#allocation4], 1
    %1877 = vsyncpa %s1876, 1

</llo_original>
